<compile_context>
chip_gen: v7x
topology: tpu7x:2x2x1
jax: 0.10.0
libtpu: 0.0.40
codegen_flags: <defaults>
</compile_context>

<pallas_src>
import functools

import jax
import jax.numpy as jnp
from jax import lax
from jax.experimental import pallas as pl
from jax.experimental.pallas import tpu as pltpu


def _round_up(n, m):
    return ((n + m - 1) // m) * m


_ALIGN = 16            # sublane alignment that is tile-clean for f32 and bf16 slabs
_UNROLL_MAX_T = 16     # fully unroll the LSTM recurrence up to this seq length
_MAX_BB = 512          # per-block batch tile cap
_VMEM_BUDGET = 24 << 20
_VMEM_LIMIT = 32 << 20  # explicit scoped-VMEM limit (safe on v5e/v6e/v7x)


# ---------------- packed-parameter slab layout (static Python ints) ----------
def _slab_layout(x_dim, h_dim):
    off = {}
    cur = 0

    def add(name, nrows):
        nonlocal cur
        cur = _round_up(cur, _ALIGN)
        off[name] = cur
        cur += nrows

    for name, nrows in (
        ("w_ih", x_dim), ("w_hh", h_dim),
        ("wg0", x_dim), ("wg1", h_dim), ("wgo", h_dim),
        ("wh0", h_dim), ("wh1", h_dim), ("who", h_dim),
        ("wf0_h", h_dim), ("wf0_g", h_dim), ("wf1", h_dim),
    ):
        add(name, nrows)
    for name in ("b_lstm", "bg0", "bg1", "bgo", "bh0", "bh1", "bho", "bf0", "bf1"):
        add(name, 1)
    total = _round_up(cur, _ALIGN)
    lane = _round_up(max(4 * h_dim, x_dim, 128), 128)
    return off, total, lane


def _pack_params(p, x_dim, h_dim, off, slab_rows, lane, dtype):
    slab = jnp.zeros((slab_rows, lane), jnp.float32)

    def put(s, name, arr):
        arr = jnp.asarray(arr, jnp.float32)
        r, c = arr.shape
        return s.at[off[name]:off[name] + r, 0:c].set(arr)

    # tanh(x) == 2*sigmoid(2x) - 1: pre-scale g-gate columns by 2 (exact in
    # f32 and bf16) so the kernel runs ONE sigmoid across all 4h gate lanes.
    gate_scale = jnp.ones((4 * h_dim,), jnp.float32).at[2 * h_dim:3 * h_dim].set(2.0)
    slab = put(slab, "w_ih", p["w_ih"] * gate_scale)
    slab = put(slab, "w_hh", p["w_hh"] * gate_scale)
    slab = put(slab, "b_lstm", p["b_lstm"] * gate_scale)

    slab = put(slab, "wg0", p["wg0"]); slab = put(slab, "bg0", p["bg0"])
    slab = put(slab, "wg1", p["wg1"]); slab = put(slab, "bg1", p["bg1"])
    slab = put(slab, "wgo", p["wgo"]); slab = put(slab, "bgo", p["bgo"])
    slab = put(slab, "wh0", p["wh0"]); slab = put(slab, "bh0", p["bh0"])
    slab = put(slab, "wh1", p["wh1"]); slab = put(slab, "bh1", p["bh1"])
    slab = put(slab, "who", p["who"]); slab = put(slab, "bho", p["bho"])
    slab = put(slab, "wf0_h", p["wf0"][:h_dim, :])
    slab = put(slab, "wf0_g", p["wf0"][h_dim:, :])
    slab = put(slab, "bf0", p["bf0"])
    slab = put(slab, "wf1", p["wf1"]); slab = put(slab, "bf1", p["bf1"])
    return slab.astype(dtype)


# ------------------------------- kernel --------------------------------------
def nsibf_kernel(x_ref, slab_ref, out_ref, *scratch,
                 seq_len, x_dim, h_dim, off, out_lanes, unroll):
    f32 = jnp.float32
    wdt = slab_ref.dtype                 # MXU operand dtype (f32 or bf16)
    bb = out_ref.shape[0]

    def w(name, rows, cols):
        r0 = off[name]
        return slab_ref[r0:r0 + rows, 0:cols]

    def bias(name, cols):
        r0 = off[name]
        return slab_ref[r0:r0 + 1, 0:cols].astype(f32)   # (1, cols) row-broadcast

    def dot(a, m):
        return jnp.dot(a.astype(wdt), m, preferred_element_type=f32)

    # ---- g branch (last timestep only); x read straight from the natural
    # (bb, T, x_dim) block, no re-layout anywhere ------------------------------
    x_last = x_ref[:, seq_len - 1, :]
    g = jax.nn.relu(dot(x_last, w("wg0", x_dim, h_dim)) + bias("bg0", h_dim))
    g = jax.nn.relu(dot(g, w("wg1", h_dim, h_dim)) + bias("bg1", h_dim))
    g_out = jnp.tanh(dot(g, w("wgo", h_dim, h_dim)) + bias("bgo", h_dim))

    # ---- LSTM recurrence ------------------------------------------------------
    w_ih = w("w_ih", x_dim, 4 * h_dim)
    w_hh = w("w_hh", h_dim, 4 * h_dim)
    b_lstm = bias("b_lstm", 4 * h_dim)

    def cell(gates, c_prev):
        s = jax.nn.sigmoid(gates)                      # one EUP pass over 4h lanes
        i_g = s[:, 0:h_dim]
        f_g = s[:, h_dim:2 * h_dim]
        g_g = 2.0 * s[:, 2 * h_dim:3 * h_dim] - 1.0    # == tanh(unscaled g gate)
        o_g = s[:, 3 * h_dim:4 * h_dim]
        c_new = f_g * c_prev + i_g * g_g
        return o_g * jnp.tanh(c_new), c_new

    h_t = jnp.zeros((bb, h_dim), f32)
    c_t = jnp.zeros((bb, h_dim), f32)

    if unroll:
        # Small static T: fully unrolled.  The x @ w_ih pushes carry no
        # dependence on h_t, so the scheduler hoists them off the serial
        # h_t @ w_hh path without keeping all T projections live at once.
        for t in range(seq_len):
            gates = dot(x_ref[:, t, :], w_ih) + b_lstm + dot(h_t, w_hh)
            h_t, c_t = cell(gates, c_t)
    else:
        # Long T: hoist the input projection into a time-major VMEM scratch
        # (off the serial path), then run the recurrence as a fori_loop so vreg
        # live ranges stay bounded and compile time stays sane.
        xp_ref, = scratch
        for t in range(seq_len):                       # cheap fill pass
            xp_ref[t] = dot(x_ref[:, t, :], w_ih) + b_lstm

        def step(t, carry):
            h_c, c_c = carry
            return cell(xp_ref[t] + dot(h_c, w_hh), c_c)

        h_t, c_t = lax.fori_loop(0, seq_len, step, (h_t, c_t))

    # ---- f branch: wf0 split into its h_t / g_out halves (no lane concat) -----
    f = jax.nn.relu(dot(h_t, w("wf0_h", h_dim, h_dim))
                    + dot(g_out, w("wf0_g", h_dim, h_dim))
                    + bias("bf0", h_dim))
    f_out = jnp.tanh(dot(f, w("wf1", h_dim, h_dim)) + bias("bf1", h_dim))

    # ---- batched h branch over [g_out ; f_out] --------------------------------
    zs = jnp.concatenate([g_out, f_out], axis=0)       # (2*bb, h) sublane concat
    h = jax.nn.relu(dot(zs, w("wh0", h_dim, h_dim)) + bias("bh0", h_dim))
    h = jax.nn.relu(dot(h, w("wh1", h_dim, h_dim)) + bias("bh1", h_dim))
    hx = dot(h, w("who", h_dim, x_dim)) + bias("bho", x_dim)   # (2*bb, x_dim)
    gx = hx[0:bb, :]
    fx = hx[bb:2 * bb, :]

    # ---- direct slice-stores into the single lane-dense 128-wide output tile --
    odt = out_ref.dtype
    out_ref[:, 0:h_dim] = g_out.astype(odt)
    out_ref[:, h_dim:h_dim + x_dim] = gx.astype(odt)
    out_ref[:, h_dim + x_dim:2 * h_dim + x_dim] = f_out.astype(odt)
    out_ref[:, 2 * h_dim + x_dim:2 * h_dim + 2 * x_dim] = fx.astype(odt)
    used = 2 * h_dim + 2 * x_dim
    if used < out_lanes:
        out_ref[:, used:out_lanes] = jnp.zeros((bb, out_lanes - used), odt)


# ------------------------------- wrapper --------------------------------------
def nsibf_forward(x, p, *, param_dtype=jnp.float32):
    """NSIBF forward.  x: (B, T, x_dim) in its natural layout."""
    B, T, x_dim = x.shape
    h_dim = p["wgo"].shape[0]
    out_lanes = _round_up(2 * h_dim + 2 * x_dim, 128)
    unroll = T <= _UNROLL_MAX_T

    # ---- batch tiling ----------------------------------------------------------
    if B <= 8:
        bb = B                       # single block == full dims, no padding at all
    else:
        # >= 2 blocks for B >= 16 so the "parallel" grid axis feeds both v7x
        # TensorCores; cap the block so the per-block working set (incl. the
        # hoisted projection scratch on the long-T path) fits the scoped-VMEM
        # budget on every generation.
        bytes_per_row = (2 * T * x_dim * 4            # x block, double-buffered
                         + 2 * out_lanes * 4          # out block, double-buffered
                         + 32 * out_lanes * 4)        # in-kernel temporaries (slack)
        if not unroll:
            bytes_per_row += T * 4 * h_dim * 4        # time-major xproj scratch
        cap = max(8, (_VMEM_BUDGET // bytes_per_row) // 8 * 8)
        bb = min(_MAX_BB, _round_up((B + 1) // 2, 8), cap)
    b_pad = _round_up(B, bb)
    n_blk = b_pad // bb

    # Batch-only pad (no cast / reshape / transpose of x), and only when B does
    # not divide into the chosen batch blocks.
    x_in = x if b_pad == B else jnp.pad(x, ((0, b_pad - B), (0, 0), (0, 0)))

    off, slab_rows, lane = _slab_layout(x_dim, h_dim)
    slab = _pack_params(p, x_dim, h_dim, off, slab_rows, lane, param_dtype)

    kernel = functools.partial(
        nsibf_kernel, seq_len=T, x_dim=x_dim, h_dim=h_dim, off=off,
        out_lanes=out_lanes, unroll=unroll)

    scratch_shapes = [] if unroll else [pltpu.VMEM((T, bb, 4 * h_dim), jnp.float32)]

    out = pl.pallas_call(
        kernel,
        out_shape=jax.ShapeDtypeStruct((b_pad, out_lanes), jnp.float32),
        grid=(n_blk,),
        in_specs=[
            pl.BlockSpec((bb, T, x_dim), lambda i: (i, 0, 0)),
            pl.BlockSpec((slab_rows, lane), lambda i: (0, 0)),
        ],
        out_specs=pl.BlockSpec((bb, out_lanes), lambda i: (i, 0)),
        scratch_shapes=scratch_shapes,
        compiler_params=pltpu.CompilerParams(
            dimension_semantics=("parallel",),
            vmem_limit_bytes=_VMEM_LIMIT),
    )(x_in, slab)

    gz = out[:B, 0:h_dim]
    gx = out[:B, h_dim:h_dim + x_dim]
    fz = out[:B, h_dim + x_dim:2 * h_dim + x_dim]
    fx = out[:B, 2 * h_dim + x_dim:2 * h_dim + 2 * x_dim]
    return gz, gx, fz, fx


# ---------------- deterministic parameter construction ----------------
def make_params(key, x_dim, h_dim):
    ks = jax.random.split(key, 32)
    it = iter(ks)

    def u(shape, fan_in):
        bound = 1.0 / jnp.sqrt(jnp.float32(fan_in))
        return jax.random.uniform(next(it), shape, jnp.float32, -bound, bound)

    # Linear weights stored already transposed: (in, out); biases as (1, out).
    p = {}
    # LSTM: PyTorch weight_ih (4h, x), weight_hh (4h, h), biases (4h,)
    p["w_ih"] = u((x_dim, 4 * h_dim), h_dim)
    p["w_hh"] = u((h_dim, 4 * h_dim), h_dim)
    p["b_lstm"] = u((1, 4 * h_dim), h_dim) + u((1, 4 * h_dim), h_dim)  # b_ih + b_hh
    # g_dense
    p["wg0"], p["bg0"] = u((x_dim, h_dim), x_dim), u((1, h_dim), x_dim)
    p["wg1"], p["bg1"] = u((h_dim, h_dim), h_dim), u((1, h_dim), h_dim)
    # g_out
    p["wgo"], p["bgo"] = u((h_dim, h_dim), h_dim), u((1, h_dim), h_dim)
    # h_dense
    p["wh0"], p["bh0"] = u((h_dim, h_dim), h_dim), u((1, h_dim), h_dim)
    p["wh1"], p["bh1"] = u((h_dim, h_dim), h_dim), u((1, h_dim), h_dim)
    # h_out
    p["who"], p["bho"] = u((h_dim, x_dim), h_dim), u((1, x_dim), h_dim)
    # f_out
    p["wf0"], p["bf0"] = u((2 * h_dim, h_dim), 2 * h_dim), u((1, h_dim), 2 * h_dim)
    p["wf1"], p["bf1"] = u((h_dim, h_dim), h_dim), u((1, h_dim), h_dim)
    return p


# ---------------- pure-JAX reference (for correctness check) ----------------
def nsibf_reference(x, p):
    x = x.astype(jnp.float32)
    B, T, x_dim = x.shape
    h_dim = p["wgo"].shape[0]

    def lin(z, w, b):
        return z @ w + b

    x_t = x[:, -1, :]
    g = jax.nn.relu(lin(x_t, p["wg0"], p["bg0"]))
    g = jax.nn.relu(lin(g, p["wg1"], p["bg1"]))
    g_out = jnp.tanh(lin(g, p["wgo"], p["bgo"]))

    def h_branch(z):
        h = jax.nn.relu(lin(z, p["wh0"], p["bh0"]))
        h = jax.nn.relu(lin(h, p["wh1"], p["bh1"]))
        return lin(h, p["who"], p["bho"])

    h_out = h_branch(g_out)

    h_t = jnp.zeros((B, h_dim), jnp.float32)
    c_t = jnp.zeros((B, h_dim), jnp.float32)
    for t in range(T):
        gates = x[:, t, :] @ p["w_ih"] + h_t @ p["w_hh"] + p["b_lstm"]
        i_g = jax.nn.sigmoid(gates[:, :h_dim])
        f_g = jax.nn.sigmoid(gates[:, h_dim:2 * h_dim])
        g_g = jnp.tanh(gates[:, 2 * h_dim:3 * h_dim])
        o_g = jax.nn.sigmoid(gates[:, 3 * h_dim:])
        c_t = f_g * c_t + i_g * g_g
        h_t = o_g * jnp.tanh(c_t)

    f_cat = jnp.concatenate([h_t, g_out], axis=-1)
    f = jax.nn.relu(lin(f_cat, p["wf0"], p["bf0"]))
    f_out = jnp.tanh(lin(f, p["wf1"], p["bf1"]))
    fh_out = h_branch(f_out)
    return g_out, h_out, f_out, fh_out


if __name__ == "__main__":
    key = jax.random.PRNGKey(0)

    def check(B, T, x_dim, h_dim, param_dtype, tol):
        k_x, k_p = jax.random.split(jax.random.fold_in(key, B * 1000 + T))
        x = jax.random.normal(k_x, (B, T, x_dim), jnp.float32)
        params = make_params(k_p, x_dim, h_dim)
        outs = jax.block_until_ready(
            nsibf_forward(x, params, param_dtype=param_dtype))
        refs = nsibf_reference(x, params)
        for o, r in zip(outs, refs):
            assert o.shape == r.shape and o.dtype == r.dtype
            err = jnp.max(jnp.abs(o - r))
            assert jnp.allclose(o, r, atol=tol, rtol=tol), (
                f"mismatch B={B} T={T} dtype={param_dtype}: max_abs_err={err}")

    # Base config (B=2, T=8): exact f32 MXU path, tight tolerance.
    check(2, 8, 16, 32, jnp.float32, 1e-4)
    # bf16 MXU-operand path (production default for large shapes), looser tol.
    check(2, 8, 16, 32, jnp.bfloat16, 5e-2)
    # Multi-block grid + padded batch + long-T fori_loop recurrence path.
    check(20, 24, 16, 32, jnp.float32, 1e-4)

    print("KERNEL_OK")
</pallas_src>

<mosaic_0001>
module attributes {stable_mosaic.version = 11 : i64} {
  func.func @nsibf_kernel(%arg0: i32, %arg1: memref<2x8x16xf32, #tpu.memory_space<vmem>>, %arg2: memref<464x128xf32, #tpu.memory_space<vmem>>, %arg3: memref<2x128xf32, #tpu.memory_space<vmem>>) attributes {dimension_semantics = [#tpu.dimension_semantics<parallel>], iteration_bounds = array<i64: 1>, scalar_prefetch = 0 : i64, scratch_operands = 0 : i64, tpu.core_type = #tpu.core_type<tc>, window_params = [{transform_indices = @transform_0, window_bounds = array<i64: 2, 8, 16>}, {pipeline_mode = #tpu.pipeline_mode<synchronous>, transform_indices = @transform_1, window_bounds = array<i64: 464, 128>}, {transform_indices = @transform_2, window_bounds = array<i64: 2, 128>}]} {
    %c0 = arith.constant 0 : index
    %c7 = arith.constant 7 : index
    %c0_0 = arith.constant 0 : index
    %0 = vector.load %arg1[%c0, %c7, %c0_0] : memref<2x8x16xf32, #tpu.memory_space<vmem>>, vector<2x1x16xf32>
    %1 = vector.shape_cast %0 : vector<2x1x16xf32> to vector<2x16xf32>
    %c48 = arith.constant 48 : index
    %c0_1 = arith.constant 0 : index
    %2 = vector.load %arg2[%c48, %c0_1] : memref<464x128xf32, #tpu.memory_space<vmem>>, vector<16x32xf32>
    %cst = arith.constant dense<0.000000e+00> : vector<2x32xf32>
    %3 = tpu.matmul %1, %2, %cst {dimension_numbers = #tpu.dot_dimension_numbers<[1], [0], [0], [1], [0, 0, 1, 1], [], []>} : vector<2x16xf32>, vector<16x32xf32>, vector<2x32xf32> -> vector<2x32xf32>
    %c336 = arith.constant 336 : index
    %c0_2 = arith.constant 0 : index
    %4 = vector.load %arg2[%c336, %c0_2] : memref<464x128xf32, #tpu.memory_space<vmem>>, vector<1x32xf32>
    %5 = vector.broadcast %4 : vector<1x32xf32> to vector<2x32xf32>
    %6 = arith.addf %3, %5 : vector<2x32xf32>
    %cst_3 = arith.constant 0.000000e+00 : f32
    %7 = vector.broadcast %cst_3 : f32 to vector<2x32xf32>
    %8 = arith.maximumf %6, %7 : vector<2x32xf32>
    %c64 = arith.constant 64 : index
    %c0_4 = arith.constant 0 : index
    %9 = vector.load %arg2[%c64, %c0_4] : memref<464x128xf32, #tpu.memory_space<vmem>>, vector<32x32xf32>
    %cst_5 = arith.constant dense<0.000000e+00> : vector<2x32xf32>
    %10 = tpu.matmul %8, %9, %cst_5 {dimension_numbers = #tpu.dot_dimension_numbers<[1], [0], [0], [1], [0, 0, 1, 1], [], []>} : vector<2x32xf32>, vector<32x32xf32>, vector<2x32xf32> -> vector<2x32xf32>
    %c352 = arith.constant 352 : index
    %c0_6 = arith.constant 0 : index
    %11 = vector.load %arg2[%c352, %c0_6] : memref<464x128xf32, #tpu.memory_space<vmem>>, vector<1x32xf32>
    %12 = vector.broadcast %11 : vector<1x32xf32> to vector<2x32xf32>
    %13 = arith.addf %10, %12 : vector<2x32xf32>
    %cst_7 = arith.constant 0.000000e+00 : f32
    %14 = vector.broadcast %cst_7 : f32 to vector<2x32xf32>
    %15 = arith.maximumf %13, %14 : vector<2x32xf32>
    %c96 = arith.constant 96 : index
    %c0_8 = arith.constant 0 : index
    %16 = vector.load %arg2[%c96, %c0_8] : memref<464x128xf32, #tpu.memory_space<vmem>>, vector<32x32xf32>
    %cst_9 = arith.constant dense<0.000000e+00> : vector<2x32xf32>
    %17 = tpu.matmul %15, %16, %cst_9 {dimension_numbers = #tpu.dot_dimension_numbers<[1], [0], [0], [1], [0, 0, 1, 1], [], []>} : vector<2x32xf32>, vector<32x32xf32>, vector<2x32xf32> -> vector<2x32xf32>
    %c368 = arith.constant 368 : index
    %c0_10 = arith.constant 0 : index
    %18 = vector.load %arg2[%c368, %c0_10] : memref<464x128xf32, #tpu.memory_space<vmem>>, vector<1x32xf32>
    %19 = vector.broadcast %18 : vector<1x32xf32> to vector<2x32xf32>
    %20 = arith.addf %17, %19 : vector<2x32xf32>
    %21 = math.tanh %20 : vector<2x32xf32>
    %c0_11 = arith.constant 0 : index
    %c0_12 = arith.constant 0 : index
    %22 = vector.load %arg2[%c0_11, %c0_12] : memref<464x128xf32, #tpu.memory_space<vmem>>, vector<16x128xf32>
    %c16 = arith.constant 16 : index
    %c0_13 = arith.constant 0 : index
    %23 = vector.load %arg2[%c16, %c0_13] : memref<464x128xf32, #tpu.memory_space<vmem>>, vector<32x128xf32>
    %c320 = arith.constant 320 : index
    %c0_14 = arith.constant 0 : index
    %24 = vector.load %arg2[%c320, %c0_14] : memref<464x128xf32, #tpu.memory_space<vmem>>, vector<1x128xf32>
    %cst_15 = arith.constant 0.000000e+00 : f32
    %25 = vector.broadcast %cst_15 : f32 to vector<2x32xf32>
    %cst_16 = arith.constant 0.000000e+00 : f32
    %26 = vector.broadcast %cst_16 : f32 to vector<2x32xf32>
    %c0_17 = arith.constant 0 : index
    %c0_18 = arith.constant 0 : index
    %c0_19 = arith.constant 0 : index
    %27 = vector.load %arg1[%c0_17, %c0_18, %c0_19] : memref<2x8x16xf32, #tpu.memory_space<vmem>>, vector<2x1x16xf32>
    %28 = vector.shape_cast %27 : vector<2x1x16xf32> to vector<2x16xf32>
    %cst_20 = arith.constant dense<0.000000e+00> : vector<2x128xf32>
    %29 = tpu.matmul %28, %22, %cst_20 {dimension_numbers = #tpu.dot_dimension_numbers<[1], [0], [0], [1], [0, 0, 1, 1], [], []>} : vector<2x16xf32>, vector<16x128xf32>, vector<2x128xf32> -> vector<2x128xf32>
    %30 = vector.broadcast %24 : vector<1x128xf32> to vector<2x128xf32>
    %31 = arith.addf %29, %30 : vector<2x128xf32>
    %cst_21 = arith.constant dense<0.000000e+00> : vector<2x128xf32>
    %32 = tpu.matmul %25, %23, %cst_21 {dimension_numbers = #tpu.dot_dimension_numbers<[1], [0], [0], [1], [0, 0, 1, 1], [], []>} : vector<2x32xf32>, vector<32x128xf32>, vector<2x128xf32> -> vector<2x128xf32>
    %33 = arith.addf %31, %32 : vector<2x128xf32>
    %34 = arith.negf %33 : vector<2x128xf32>
    %35 = math.exp %34 : vector<2x128xf32>
    %cst_22 = arith.constant 1.000000e+00 : f32
    %36 = vector.broadcast %cst_22 : f32 to vector<2x128xf32>
    %37 = arith.addf %36, %35 : vector<2x128xf32>
    %38 = arith.divf %36, %37 : vector<2x128xf32>
    %39 = vector.extract_strided_slice %38 {offsets = [0, 0], sizes = [2, 32], strides = [1, 1]} : vector<2x128xf32> to vector<2x32xf32>
    %40 = vector.extract_strided_slice %38 {offsets = [0, 32], sizes = [2, 32], strides = [1, 1]} : vector<2x128xf32> to vector<2x32xf32>
    %41 = vector.extract_strided_slice %38 {offsets = [0, 64], sizes = [2, 32], strides = [1, 1]} : vector<2x128xf32> to vector<2x32xf32>
    %cst_23 = arith.constant 2.000000e+00 : f32
    %42 = vector.broadcast %cst_23 : f32 to vector<2x32xf32>
    %43 = arith.mulf %42, %41 : vector<2x32xf32>
    %cst_24 = arith.constant 1.000000e+00 : f32
    %44 = vector.broadcast %cst_24 : f32 to vector<2x32xf32>
    %45 = arith.subf %43, %44 : vector<2x32xf32>
    %46 = vector.extract_strided_slice %38 {offsets = [0, 96], sizes = [2, 32], strides = [1, 1]} : vector<2x128xf32> to vector<2x32xf32>
    %47 = arith.mulf %40, %26 : vector<2x32xf32>
    %48 = arith.mulf %39, %45 : vector<2x32xf32>
    %49 = arith.addf %47, %48 : vector<2x32xf32>
    %50 = math.tanh %49 : vector<2x32xf32>
    %51 = arith.mulf %46, %50 : vector<2x32xf32>
    %c0_25 = arith.constant 0 : index
    %c1 = arith.constant 1 : index
    %c0_26 = arith.constant 0 : index
    %52 = vector.load %arg1[%c0_25, %c1, %c0_26] : memref<2x8x16xf32, #tpu.memory_space<vmem>>, vector<2x1x16xf32>
    %53 = vector.shape_cast %52 : vector<2x1x16xf32> to vector<2x16xf32>
    %cst_27 = arith.constant dense<0.000000e+00> : vector<2x128xf32>
    %54 = tpu.matmul %53, %22, %cst_27 {dimension_numbers = #tpu.dot_dimension_numbers<[1], [0], [0], [1], [0, 0, 1, 1], [], []>} : vector<2x16xf32>, vector<16x128xf32>, vector<2x128xf32> -> vector<2x128xf32>
    %55 = vector.broadcast %24 : vector<1x128xf32> to vector<2x128xf32>
    %56 = arith.addf %54, %55 : vector<2x128xf32>
    %cst_28 = arith.constant dense<0.000000e+00> : vector<2x128xf32>
    %57 = tpu.matmul %51, %23, %cst_28 {dimension_numbers = #tpu.dot_dimension_numbers<[1], [0], [0], [1], [0, 0, 1, 1], [], []>} : vector<2x32xf32>, vector<32x128xf32>, vector<2x128xf32> -> vector<2x128xf32>
    %58 = arith.addf %56, %57 : vector<2x128xf32>
    %59 = arith.negf %58 : vector<2x128xf32>
    %60 = math.exp %59 : vector<2x128xf32>
    %cst_29 = arith.constant 1.000000e+00 : f32
    %61 = vector.broadcast %cst_29 : f32 to vector<2x128xf32>
    %62 = arith.addf %61, %60 : vector<2x128xf32>
    %63 = arith.divf %61, %62 : vector<2x128xf32>
    %64 = vector.extract_strided_slice %63 {offsets = [0, 0], sizes = [2, 32], strides = [1, 1]} : vector<2x128xf32> to vector<2x32xf32>
    %65 = vector.extract_strided_slice %63 {offsets = [0, 32], sizes = [2, 32], strides = [1, 1]} : vector<2x128xf32> to vector<2x32xf32>
    %66 = vector.extract_strided_slice %63 {offsets = [0, 64], sizes = [2, 32], strides = [1, 1]} : vector<2x128xf32> to vector<2x32xf32>
    %cst_30 = arith.constant 2.000000e+00 : f32
    %67 = vector.broadcast %cst_30 : f32 to vector<2x32xf32>
    %68 = arith.mulf %67, %66 : vector<2x32xf32>
    %cst_31 = arith.constant 1.000000e+00 : f32
    %69 = vector.broadcast %cst_31 : f32 to vector<2x32xf32>
    %70 = arith.subf %68, %69 : vector<2x32xf32>
    %71 = vector.extract_strided_slice %63 {offsets = [0, 96], sizes = [2, 32], strides = [1, 1]} : vector<2x128xf32> to vector<2x32xf32>
    %72 = arith.mulf %65, %49 : vector<2x32xf32>
    %73 = arith.mulf %64, %70 : vector<2x32xf32>
    %74 = arith.addf %72, %73 : vector<2x32xf32>
    %75 = math.tanh %74 : vector<2x32xf32>
    %76 = arith.mulf %71, %75 : vector<2x32xf32>
    %c0_32 = arith.constant 0 : index
    %c2 = arith.constant 2 : index
    %c0_33 = arith.constant 0 : index
    %77 = vector.load %arg1[%c0_32, %c2, %c0_33] : memref<2x8x16xf32, #tpu.memory_space<vmem>>, vector<2x1x16xf32>
    %78 = vector.shape_cast %77 : vector<2x1x16xf32> to vector<2x16xf32>
    %cst_34 = arith.constant dense<0.000000e+00> : vector<2x128xf32>
    %79 = tpu.matmul %78, %22, %cst_34 {dimension_numbers = #tpu.dot_dimension_numbers<[1], [0], [0], [1], [0, 0, 1, 1], [], []>} : vector<2x16xf32>, vector<16x128xf32>, vector<2x128xf32> -> vector<2x128xf32>
    %80 = vector.broadcast %24 : vector<1x128xf32> to vector<2x128xf32>
    %81 = arith.addf %79, %80 : vector<2x128xf32>
    %cst_35 = arith.constant dense<0.000000e+00> : vector<2x128xf32>
    %82 = tpu.matmul %76, %23, %cst_35 {dimension_numbers = #tpu.dot_dimension_numbers<[1], [0], [0], [1], [0, 0, 1, 1], [], []>} : vector<2x32xf32>, vector<32x128xf32>, vector<2x128xf32> -> vector<2x128xf32>
    %83 = arith.addf %81, %82 : vector<2x128xf32>
    %84 = arith.negf %83 : vector<2x128xf32>
    %85 = math.exp %84 : vector<2x128xf32>
    %cst_36 = arith.constant 1.000000e+00 : f32
    %86 = vector.broadcast %cst_36 : f32 to vector<2x128xf32>
    %87 = arith.addf %86, %85 : vector<2x128xf32>
    %88 = arith.divf %86, %87 : vector<2x128xf32>
    %89 = vector.extract_strided_slice %88 {offsets = [0, 0], sizes = [2, 32], strides = [1, 1]} : vector<2x128xf32> to vector<2x32xf32>
    %90 = vector.extract_strided_slice %88 {offsets = [0, 32], sizes = [2, 32], strides = [1, 1]} : vector<2x128xf32> to vector<2x32xf32>
    %91 = vector.extract_strided_slice %88 {offsets = [0, 64], sizes = [2, 32], strides = [1, 1]} : vector<2x128xf32> to vector<2x32xf32>
    %cst_37 = arith.constant 2.000000e+00 : f32
    %92 = vector.broadcast %cst_37 : f32 to vector<2x32xf32>
    %93 = arith.mulf %92, %91 : vector<2x32xf32>
    %cst_38 = arith.constant 1.000000e+00 : f32
    %94 = vector.broadcast %cst_38 : f32 to vector<2x32xf32>
    %95 = arith.subf %93, %94 : vector<2x32xf32>
    %96 = vector.extract_strided_slice %88 {offsets = [0, 96], sizes = [2, 32], strides = [1, 1]} : vector<2x128xf32> to vector<2x32xf32>
    %97 = arith.mulf %90, %74 : vector<2x32xf32>
    %98 = arith.mulf %89, %95 : vector<2x32xf32>
    %99 = arith.addf %97, %98 : vector<2x32xf32>
    %100 = math.tanh %99 : vector<2x32xf32>
    %101 = arith.mulf %96, %100 : vector<2x32xf32>
    %c0_39 = arith.constant 0 : index
    %c3 = arith.constant 3 : index
    %c0_40 = arith.constant 0 : index
    %102 = vector.load %arg1[%c0_39, %c3, %c0_40] : memref<2x8x16xf32, #tpu.memory_space<vmem>>, vector<2x1x16xf32>
    %103 = vector.shape_cast %102 : vector<2x1x16xf32> to vector<2x16xf32>
    %cst_41 = arith.constant dense<0.000000e+00> : vector<2x128xf32>
    %104 = tpu.matmul %103, %22, %cst_41 {dimension_numbers = #tpu.dot_dimension_numbers<[1], [0], [0], [1], [0, 0, 1, 1], [], []>} : vector<2x16xf32>, vector<16x128xf32>, vector<2x128xf32> -> vector<2x128xf32>
    %105 = vector.broadcast %24 : vector<1x128xf32> to vector<2x128xf32>
    %106 = arith.addf %104, %105 : vector<2x128xf32>
    %cst_42 = arith.constant dense<0.000000e+00> : vector<2x128xf32>
    %107 = tpu.matmul %101, %23, %cst_42 {dimension_numbers = #tpu.dot_dimension_numbers<[1], [0], [0], [1], [0, 0, 1, 1], [], []>} : vector<2x32xf32>, vector<32x128xf32>, vector<2x128xf32> -> vector<2x128xf32>
    %108 = arith.addf %106, %107 : vector<2x128xf32>
    %109 = arith.negf %108 : vector<2x128xf32>
    %110 = math.exp %109 : vector<2x128xf32>
    %cst_43 = arith.constant 1.000000e+00 : f32
    %111 = vector.broadcast %cst_43 : f32 to vector<2x128xf32>
    %112 = arith.addf %111, %110 : vector<2x128xf32>
    %113 = arith.divf %111, %112 : vector<2x128xf32>
    %114 = vector.extract_strided_slice %113 {offsets = [0, 0], sizes = [2, 32], strides = [1, 1]} : vector<2x128xf32> to vector<2x32xf32>
    %115 = vector.extract_strided_slice %113 {offsets = [0, 32], sizes = [2, 32], strides = [1, 1]} : vector<2x128xf32> to vector<2x32xf32>
    %116 = vector.extract_strided_slice %113 {offsets = [0, 64], sizes = [2, 32], strides = [1, 1]} : vector<2x128xf32> to vector<2x32xf32>
    %cst_44 = arith.constant 2.000000e+00 : f32
    %117 = vector.broadcast %cst_44 : f32 to vector<2x32xf32>
    %118 = arith.mulf %117, %116 : vector<2x32xf32>
    %cst_45 = arith.constant 1.000000e+00 : f32
    %119 = vector.broadcast %cst_45 : f32 to vector<2x32xf32>
    %120 = arith.subf %118, %119 : vector<2x32xf32>
    %121 = vector.extract_strided_slice %113 {offsets = [0, 96], sizes = [2, 32], strides = [1, 1]} : vector<2x128xf32> to vector<2x32xf32>
    %122 = arith.mulf %115, %99 : vector<2x32xf32>
    %123 = arith.mulf %114, %120 : vector<2x32xf32>
    %124 = arith.addf %122, %123 : vector<2x32xf32>
    %125 = math.tanh %124 : vector<2x32xf32>
    %126 = arith.mulf %121, %125 : vector<2x32xf32>
    %c0_46 = arith.constant 0 : index
    %c4 = arith.constant 4 : index
    %c0_47 = arith.constant 0 : index
    %127 = vector.load %arg1[%c0_46, %c4, %c0_47] : memref<2x8x16xf32, #tpu.memory_space<vmem>>, vector<2x1x16xf32>
    %128 = vector.shape_cast %127 : vector<2x1x16xf32> to vector<2x16xf32>
    %cst_48 = arith.constant dense<0.000000e+00> : vector<2x128xf32>
    %129 = tpu.matmul %128, %22, %cst_48 {dimension_numbers = #tpu.dot_dimension_numbers<[1], [0], [0], [1], [0, 0, 1, 1], [], []>} : vector<2x16xf32>, vector<16x128xf32>, vector<2x128xf32> -> vector<2x128xf32>
    %130 = vector.broadcast %24 : vector<1x128xf32> to vector<2x128xf32>
    %131 = arith.addf %129, %130 : vector<2x128xf32>
    %cst_49 = arith.constant dense<0.000000e+00> : vector<2x128xf32>
    %132 = tpu.matmul %126, %23, %cst_49 {dimension_numbers = #tpu.dot_dimension_numbers<[1], [0], [0], [1], [0, 0, 1, 1], [], []>} : vector<2x32xf32>, vector<32x128xf32>, vector<2x128xf32> -> vector<2x128xf32>
    %133 = arith.addf %131, %132 : vector<2x128xf32>
    %134 = arith.negf %133 : vector<2x128xf32>
    %135 = math.exp %134 : vector<2x128xf32>
    %cst_50 = arith.constant 1.000000e+00 : f32
    %136 = vector.broadcast %cst_50 : f32 to vector<2x128xf32>
    %137 = arith.addf %136, %135 : vector<2x128xf32>
    %138 = arith.divf %136, %137 : vector<2x128xf32>
    %139 = vector.extract_strided_slice %138 {offsets = [0, 0], sizes = [2, 32], strides = [1, 1]} : vector<2x128xf32> to vector<2x32xf32>
    %140 = vector.extract_strided_slice %138 {offsets = [0, 32], sizes = [2, 32], strides = [1, 1]} : vector<2x128xf32> to vector<2x32xf32>
    %141 = vector.extract_strided_slice %138 {offsets = [0, 64], sizes = [2, 32], strides = [1, 1]} : vector<2x128xf32> to vector<2x32xf32>
    %cst_51 = arith.constant 2.000000e+00 : f32
    %142 = vector.broadcast %cst_51 : f32 to vector<2x32xf32>
    %143 = arith.mulf %142, %141 : vector<2x32xf32>
    %cst_52 = arith.constant 1.000000e+00 : f32
    %144 = vector.broadcast %cst_52 : f32 to vector<2x32xf32>
    %145 = arith.subf %143, %144 : vector<2x32xf32>
    %146 = vector.extract_strided_slice %138 {offsets = [0, 96], sizes = [2, 32], strides = [1, 1]} : vector<2x128xf32> to vector<2x32xf32>
    %147 = arith.mulf %140, %124 : vector<2x32xf32>
    %148 = arith.mulf %139, %145 : vector<2x32xf32>
    %149 = arith.addf %147, %148 : vector<2x32xf32>
    %150 = math.tanh %149 : vector<2x32xf32>
    %151 = arith.mulf %146, %150 : vector<2x32xf32>
    %c0_53 = arith.constant 0 : index
    %c5 = arith.constant 5 : index
    %c0_54 = arith.constant 0 : index
    %152 = vector.load %arg1[%c0_53, %c5, %c0_54] : memref<2x8x16xf32, #tpu.memory_space<vmem>>, vector<2x1x16xf32>
    %153 = vector.shape_cast %152 : vector<2x1x16xf32> to vector<2x16xf32>
    %cst_55 = arith.constant dense<0.000000e+00> : vector<2x128xf32>
    %154 = tpu.matmul %153, %22, %cst_55 {dimension_numbers = #tpu.dot_dimension_numbers<[1], [0], [0], [1], [0, 0, 1, 1], [], []>} : vector<2x16xf32>, vector<16x128xf32>, vector<2x128xf32> -> vector<2x128xf32>
    %155 = vector.broadcast %24 : vector<1x128xf32> to vector<2x128xf32>
    %156 = arith.addf %154, %155 : vector<2x128xf32>
    %cst_56 = arith.constant dense<0.000000e+00> : vector<2x128xf32>
    %157 = tpu.matmul %151, %23, %cst_56 {dimension_numbers = #tpu.dot_dimension_numbers<[1], [0], [0], [1], [0, 0, 1, 1], [], []>} : vector<2x32xf32>, vector<32x128xf32>, vector<2x128xf32> -> vector<2x128xf32>
    %158 = arith.addf %156, %157 : vector<2x128xf32>
    %159 = arith.negf %158 : vector<2x128xf32>
    %160 = math.exp %159 : vector<2x128xf32>
    %cst_57 = arith.constant 1.000000e+00 : f32
    %161 = vector.broadcast %cst_57 : f32 to vector<2x128xf32>
    %162 = arith.addf %161, %160 : vector<2x128xf32>
    %163 = arith.divf %161, %162 : vector<2x128xf32>
    %164 = vector.extract_strided_slice %163 {offsets = [0, 0], sizes = [2, 32], strides = [1, 1]} : vector<2x128xf32> to vector<2x32xf32>
    %165 = vector.extract_strided_slice %163 {offsets = [0, 32], sizes = [2, 32], strides = [1, 1]} : vector<2x128xf32> to vector<2x32xf32>
    %166 = vector.extract_strided_slice %163 {offsets = [0, 64], sizes = [2, 32], strides = [1, 1]} : vector<2x128xf32> to vector<2x32xf32>
    %cst_58 = arith.constant 2.000000e+00 : f32
    %167 = vector.broadcast %cst_58 : f32 to vector<2x32xf32>
    %168 = arith.mulf %167, %166 : vector<2x32xf32>
    %cst_59 = arith.constant 1.000000e+00 : f32
    %169 = vector.broadcast %cst_59 : f32 to vector<2x32xf32>
    %170 = arith.subf %168, %169 : vector<2x32xf32>
    %171 = vector.extract_strided_slice %163 {offsets = [0, 96], sizes = [2, 32], strides = [1, 1]} : vector<2x128xf32> to vector<2x32xf32>
    %172 = arith.mulf %165, %149 : vector<2x32xf32>
    %173 = arith.mulf %164, %170 : vector<2x32xf32>
    %174 = arith.addf %172, %173 : vector<2x32xf32>
    %175 = math.tanh %174 : vector<2x32xf32>
    %176 = arith.mulf %171, %175 : vector<2x32xf32>
    %c0_60 = arith.constant 0 : index
    %c6 = arith.constant 6 : index
    %c0_61 = arith.constant 0 : index
    %177 = vector.load %arg1[%c0_60, %c6, %c0_61] : memref<2x8x16xf32, #tpu.memory_space<vmem>>, vector<2x1x16xf32>
    %178 = vector.shape_cast %177 : vector<2x1x16xf32> to vector<2x16xf32>
    %cst_62 = arith.constant dense<0.000000e+00> : vector<2x128xf32>
    %179 = tpu.matmul %178, %22, %cst_62 {dimension_numbers = #tpu.dot_dimension_numbers<[1], [0], [0], [1], [0, 0, 1, 1], [], []>} : vector<2x16xf32>, vector<16x128xf32>, vector<2x128xf32> -> vector<2x128xf32>
    %180 = vector.broadcast %24 : vector<1x128xf32> to vector<2x128xf32>
    %181 = arith.addf %179, %180 : vector<2x128xf32>
    %cst_63 = arith.constant dense<0.000000e+00> : vector<2x128xf32>
    %182 = tpu.matmul %176, %23, %cst_63 {dimension_numbers = #tpu.dot_dimension_numbers<[1], [0], [0], [1], [0, 0, 1, 1], [], []>} : vector<2x32xf32>, vector<32x128xf32>, vector<2x128xf32> -> vector<2x128xf32>
    %183 = arith.addf %181, %182 : vector<2x128xf32>
    %184 = arith.negf %183 : vector<2x128xf32>
    %185 = math.exp %184 : vector<2x128xf32>
    %cst_64 = arith.constant 1.000000e+00 : f32
    %186 = vector.broadcast %cst_64 : f32 to vector<2x128xf32>
    %187 = arith.addf %186, %185 : vector<2x128xf32>
    %188 = arith.divf %186, %187 : vector<2x128xf32>
    %189 = vector.extract_strided_slice %188 {offsets = [0, 0], sizes = [2, 32], strides = [1, 1]} : vector<2x128xf32> to vector<2x32xf32>
    %190 = vector.extract_strided_slice %188 {offsets = [0, 32], sizes = [2, 32], strides = [1, 1]} : vector<2x128xf32> to vector<2x32xf32>
    %191 = vector.extract_strided_slice %188 {offsets = [0, 64], sizes = [2, 32], strides = [1, 1]} : vector<2x128xf32> to vector<2x32xf32>
    %cst_65 = arith.constant 2.000000e+00 : f32
    %192 = vector.broadcast %cst_65 : f32 to vector<2x32xf32>
    %193 = arith.mulf %192, %191 : vector<2x32xf32>
    %cst_66 = arith.constant 1.000000e+00 : f32
    %194 = vector.broadcast %cst_66 : f32 to vector<2x32xf32>
    %195 = arith.subf %193, %194 : vector<2x32xf32>
    %196 = vector.extract_strided_slice %188 {offsets = [0, 96], sizes = [2, 32], strides = [1, 1]} : vector<2x128xf32> to vector<2x32xf32>
    %197 = arith.mulf %190, %174 : vector<2x32xf32>
    %198 = arith.mulf %189, %195 : vector<2x32xf32>
    %199 = arith.addf %197, %198 : vector<2x32xf32>
    %200 = math.tanh %199 : vector<2x32xf32>
    %201 = arith.mulf %196, %200 : vector<2x32xf32>
    %c0_67 = arith.constant 0 : index
    %c7_68 = arith.constant 7 : index
    %c0_69 = arith.constant 0 : index
    %202 = vector.load %arg1[%c0_67, %c7_68, %c0_69] : memref<2x8x16xf32, #tpu.memory_space<vmem>>, vector<2x1x16xf32>
    %203 = vector.shape_cast %202 : vector<2x1x16xf32> to vector<2x16xf32>
    %cst_70 = arith.constant dense<0.000000e+00> : vector<2x128xf32>
    %204 = tpu.matmul %203, %22, %cst_70 {dimension_numbers = #tpu.dot_dimension_numbers<[1], [0], [0], [1], [0, 0, 1, 1], [], []>} : vector<2x16xf32>, vector<16x128xf32>, vector<2x128xf32> -> vector<2x128xf32>
    %205 = vector.broadcast %24 : vector<1x128xf32> to vector<2x128xf32>
    %206 = arith.addf %204, %205 : vector<2x128xf32>
    %cst_71 = arith.constant dense<0.000000e+00> : vector<2x128xf32>
    %207 = tpu.matmul %201, %23, %cst_71 {dimension_numbers = #tpu.dot_dimension_numbers<[1], [0], [0], [1], [0, 0, 1, 1], [], []>} : vector<2x32xf32>, vector<32x128xf32>, vector<2x128xf32> -> vector<2x128xf32>
    %208 = arith.addf %206, %207 : vector<2x128xf32>
    %209 = arith.negf %208 : vector<2x128xf32>
    %210 = math.exp %209 : vector<2x128xf32>
    %cst_72 = arith.constant 1.000000e+00 : f32
    %211 = vector.broadcast %cst_72 : f32 to vector<2x128xf32>
    %212 = arith.addf %211, %210 : vector<2x128xf32>
    %213 = arith.divf %211, %212 : vector<2x128xf32>
    %214 = vector.extract_strided_slice %213 {offsets = [0, 0], sizes = [2, 32], strides = [1, 1]} : vector<2x128xf32> to vector<2x32xf32>
    %215 = vector.extract_strided_slice %213 {offsets = [0, 32], sizes = [2, 32], strides = [1, 1]} : vector<2x128xf32> to vector<2x32xf32>
    %216 = vector.extract_strided_slice %213 {offsets = [0, 64], sizes = [2, 32], strides = [1, 1]} : vector<2x128xf32> to vector<2x32xf32>
    %cst_73 = arith.constant 2.000000e+00 : f32
    %217 = vector.broadcast %cst_73 : f32 to vector<2x32xf32>
    %218 = arith.mulf %217, %216 : vector<2x32xf32>
    %cst_74 = arith.constant 1.000000e+00 : f32
    %219 = vector.broadcast %cst_74 : f32 to vector<2x32xf32>
    %220 = arith.subf %218, %219 : vector<2x32xf32>
    %221 = vector.extract_strided_slice %213 {offsets = [0, 96], sizes = [2, 32], strides = [1, 1]} : vector<2x128xf32> to vector<2x32xf32>
    %222 = arith.mulf %215, %199 : vector<2x32xf32>
    %223 = arith.mulf %214, %220 : vector<2x32xf32>
    %224 = arith.addf %222, %223 : vector<2x32xf32>
    %225 = math.tanh %224 : vector<2x32xf32>
    %226 = arith.mulf %221, %225 : vector<2x32xf32>
    %c224 = arith.constant 224 : index
    %c0_75 = arith.constant 0 : index
    %227 = vector.load %arg2[%c224, %c0_75] : memref<464x128xf32, #tpu.memory_space<vmem>>, vector<32x32xf32>
    %cst_76 = arith.constant dense<0.000000e+00> : vector<2x32xf32>
    %228 = tpu.matmul %226, %227, %cst_76 {dimension_numbers = #tpu.dot_dimension_numbers<[1], [0], [0], [1], [0, 0, 1, 1], [], []>} : vector<2x32xf32>, vector<32x32xf32>, vector<2x32xf32> -> vector<2x32xf32>
    %c256 = arith.constant 256 : index
    %c0_77 = arith.constant 0 : index
    %229 = vector.load %arg2[%c256, %c0_77] : memref<464x128xf32, #tpu.memory_space<vmem>>, vector<32x32xf32>
    %cst_78 = arith.constant dense<0.000000e+00> : vector<2x32xf32>
    %230 = tpu.matmul %21, %229, %cst_78 {dimension_numbers = #tpu.dot_dimension_numbers<[1], [0], [0], [1], [0, 0, 1, 1], [], []>} : vector<2x32xf32>, vector<32x32xf32>, vector<2x32xf32> -> vector<2x32xf32>
    %231 = arith.addf %228, %230 : vector<2x32xf32>
    %c432 = arith.constant 432 : index
    %c0_79 = arith.constant 0 : index
    %232 = vector.load %arg2[%c432, %c0_79] : memref<464x128xf32, #tpu.memory_space<vmem>>, vector<1x32xf32>
    %233 = vector.broadcast %232 : vector<1x32xf32> to vector<2x32xf32>
    %234 = arith.addf %231, %233 : vector<2x32xf32>
    %cst_80 = arith.constant 0.000000e+00 : f32
    %235 = vector.broadcast %cst_80 : f32 to vector<2x32xf32>
    %236 = arith.maximumf %234, %235 : vector<2x32xf32>
    %c288 = arith.constant 288 : index
    %c0_81 = arith.constant 0 : index
    %237 = vector.load %arg2[%c288, %c0_81] : memref<464x128xf32, #tpu.memory_space<vmem>>, vector<32x32xf32>
    %cst_82 = arith.constant dense<0.000000e+00> : vector<2x32xf32>
    %238 = tpu.matmul %236, %237, %cst_82 {dimension_numbers = #tpu.dot_dimension_numbers<[1], [0], [0], [1], [0, 0, 1, 1], [], []>} : vector<2x32xf32>, vector<32x32xf32>, vector<2x32xf32> -> vector<2x32xf32>
    %c448 = arith.constant 448 : index
    %c0_83 = arith.constant 0 : index
    %239 = vector.load %arg2[%c448, %c0_83] : memref<464x128xf32, #tpu.memory_space<vmem>>, vector<1x32xf32>
    %240 = vector.broadcast %239 : vector<1x32xf32> to vector<2x32xf32>
    %241 = arith.addf %238, %240 : vector<2x32xf32>
    %242 = math.tanh %241 : vector<2x32xf32>
    %243 = tpu.concatenate %21, %242 in 0 : vector<2x32xf32>, vector<2x32xf32> -> vector<4x32xf32>
    %c128 = arith.constant 128 : index
    %c0_84 = arith.constant 0 : index
    %244 = vector.load %arg2[%c128, %c0_84] : memref<464x128xf32, #tpu.memory_space<vmem>>, vector<32x32xf32>
    %cst_85 = arith.constant dense<0.000000e+00> : vector<4x32xf32>
    %245 = tpu.matmul %243, %244, %cst_85 {dimension_numbers = #tpu.dot_dimension_numbers<[1], [0], [0], [1], [0, 0, 1, 1], [], []>} : vector<4x32xf32>, vector<32x32xf32>, vector<4x32xf32> -> vector<4x32xf32>
    %c384 = arith.constant 384 : index
    %c0_86 = arith.constant 0 : index
    %246 = vector.load %arg2[%c384, %c0_86] : memref<464x128xf32, #tpu.memory_space<vmem>>, vector<1x32xf32>
    %247 = vector.broadcast %246 : vector<1x32xf32> to vector<4x32xf32>
    %248 = arith.addf %245, %247 : vector<4x32xf32>
    %cst_87 = arith.constant 0.000000e+00 : f32
    %249 = vector.broadcast %cst_87 : f32 to vector<4x32xf32>
    %250 = arith.maximumf %248, %249 : vector<4x32xf32>
    %c160 = arith.constant 160 : index
    %c0_88 = arith.constant 0 : index
    %251 = vector.load %arg2[%c160, %c0_88] : memref<464x128xf32, #tpu.memory_space<vmem>>, vector<32x32xf32>
    %cst_89 = arith.constant dense<0.000000e+00> : vector<4x32xf32>
    %252 = tpu.matmul %250, %251, %cst_89 {dimension_numbers = #tpu.dot_dimension_numbers<[1], [0], [0], [1], [0, 0, 1, 1], [], []>} : vector<4x32xf32>, vector<32x32xf32>, vector<4x32xf32> -> vector<4x32xf32>
    %c400 = arith.constant 400 : index
    %c0_90 = arith.constant 0 : index
    %253 = vector.load %arg2[%c400, %c0_90] : memref<464x128xf32, #tpu.memory_space<vmem>>, vector<1x32xf32>
    %254 = vector.broadcast %253 : vector<1x32xf32> to vector<4x32xf32>
    %255 = arith.addf %252, %254 : vector<4x32xf32>
    %cst_91 = arith.constant 0.000000e+00 : f32
    %256 = vector.broadcast %cst_91 : f32 to vector<4x32xf32>
    %257 = arith.maximumf %255, %256 : vector<4x32xf32>
    %c192 = arith.constant 192 : index
    %c0_92 = arith.constant 0 : index
    %258 = vector.load %arg2[%c192, %c0_92] : memref<464x128xf32, #tpu.memory_space<vmem>>, vector<32x16xf32>
    %cst_93 = arith.constant dense<0.000000e+00> : vector<4x16xf32>
    %259 = tpu.matmul %257, %258, %cst_93 {dimension_numbers = #tpu.dot_dimension_numbers<[1], [0], [0], [1], [0, 0, 1, 1], [], []>} : vector<4x32xf32>, vector<32x16xf32>, vector<4x16xf32> -> vector<4x16xf32>
    %c416 = arith.constant 416 : index
    %c0_94 = arith.constant 0 : index
    %260 = vector.load %arg2[%c416, %c0_94] : memref<464x128xf32, #tpu.memory_space<vmem>>, vector<1x16xf32>
    %261 = vector.broadcast %260 : vector<1x16xf32> to vector<4x16xf32>
    %262 = arith.addf %259, %261 : vector<4x16xf32>
    %263 = vector.extract_strided_slice %262 {offsets = [0, 0], sizes = [2, 16], strides = [1, 1]} : vector<4x16xf32> to vector<2x16xf32>
    %264 = vector.extract_strided_slice %262 {offsets = [2, 0], sizes = [2, 16], strides = [1, 1]} : vector<4x16xf32> to vector<2x16xf32>
    %c0_95 = arith.constant 0 : index
    %c0_96 = arith.constant 0 : index
    %265 = vector.load %arg3[%c0_95, %c0_96] : memref<2x128xf32, #tpu.memory_space<vmem>>, vector<2x32xf32>
    tpu.vector_store %arg3[%c0_95, %c0_96], %21 {strides = array<i32>} : memref<2x128xf32, #tpu.memory_space<vmem>>, vector<2x32xf32>,
    %c0_97 = arith.constant 0 : index
    %c32 = arith.constant 32 : index
    %266 = vector.load %arg3[%c0_97, %c32] : memref<2x128xf32, #tpu.memory_space<vmem>>, vector<2x16xf32>
    tpu.vector_store %arg3[%c0_97, %c32], %263 {strides = array<i32>} : memref<2x128xf32, #tpu.memory_space<vmem>>, vector<2x16xf32>,
    %c0_98 = arith.constant 0 : index
    %c48_99 = arith.constant 48 : index
    %267 = vector.load %arg3[%c0_98, %c48_99] : memref<2x128xf32, #tpu.memory_space<vmem>>, vector<2x32xf32>
    tpu.vector_store %arg3[%c0_98, %c48_99], %242 {strides = array<i32>} : memref<2x128xf32, #tpu.memory_space<vmem>>, vector<2x32xf32>,
    %c0_100 = arith.constant 0 : index
    %c80 = arith.constant 80 : index
    %268 = vector.load %arg3[%c0_100, %c80] : memref<2x128xf32, #tpu.memory_space<vmem>>, vector<2x16xf32>
    tpu.vector_store %arg3[%c0_100, %c80], %264 {strides = array<i32>} : memref<2x128xf32, #tpu.memory_space<vmem>>, vector<2x16xf32>,
    %cst_101 = arith.constant 0.000000e+00 : f32
    %269 = vector.broadcast %cst_101 : f32 to vector<2x32xf32>
    %c0_102 = arith.constant 0 : index
    %c96_103 = arith.constant 96 : index
    %270 = vector.load %arg3[%c0_102, %c96_103] : memref<2x128xf32, #tpu.memory_space<vmem>>, vector<2x32xf32>
    tpu.vector_store %arg3[%c0_102, %c96_103], %269 {strides = array<i32>} : memref<2x128xf32, #tpu.memory_space<vmem>>, vector<2x32xf32>,
    return
  }
  func.func @transform_0(%arg0: i32) -> (i32, i32, i32) {
    %c0_i32 = arith.constant 0 : i32
    %c0_i32_0 = arith.constant 0 : i32
    %c0_i32_1 = arith.constant 0 : i32
    return %arg0, %c0_i32, %c0_i32_0 : i32, i32, i32
  }
  func.func @transform_1(%arg0: i32) -> (i32, i32) {
    %c0_i32 = arith.constant 0 : i32
    %c0_i32_0 = arith.constant 0 : i32
    %c0_i32_1 = arith.constant 0 : i32
    return %c0_i32, %c0_i32_0 : i32, i32
  }
  func.func @transform_2(%arg0: i32) -> (i32, i32) {
    %c0_i32 = arith.constant 0 : i32
    %c0_i32_0 = arith.constant 0 : i32
    return %arg0, %c0_i32 : i32, i32
  }
}

</mosaic_0001>

<llo_original>
// kernel: tpu_custom_call.1
$region0: #{tpu_custom_call.1}
  #allocation0 [shape = 'u32[]', space=smem, size = 0x4, offset = 0x4, fixed_abs, tag = 'smem constant byte address 0x4 - core index']
  #allocation1 [shape = 'u32[144,128]{1,0:T(1,128)}', space=vmem, size = 0x12000, scoped, tag = 'internal scratch']
  %s0 = inlined_call_operand.hbm [shape: f32[2,8,16], index: 0, kind: input, shape index: {}]
  %s1 = inlined_call_operand.hbm [shape: f32[464,128], index: 1, kind: input, shape index: {}]
  %s2 = inlined_call_operand.hbm [shape: f32[2,128], index: 2, kind: output, shape index: {}]
  %s3 = sld [smem:[#allocation0]]
  $region26: #{tpu_custom_call.1} parent=0
    _
  %s5 = ssub.s32 1, %s3
  %s6 = scalar_select 0, %s5, %s3
  $region1: #{tpu_custom_call.1} parent=0
    #allocation2 [shape = 'u8[8192]{0}', space=vmem, size = 0x2000, scoped, tag = 'input window, operand 0, single buffered']
    #allocation3 [shape = 's32[1]{0}', space=sflag, size = 0x4, scoped, tag = 'scoped memory for tpu_custom_call.1']
    #allocation4 [shape = 's32[1]{0}', space=sflag, size = 0x4, scoped, tag = 'scoped memory for tpu_custom_call.1']
    #allocation5 [shape = 'u8[237568]{0}', space=vmem, size = 0x3a000, scoped, tag = 'input window, operand 1, single buffered']
    #allocation6 [shape = 's32[1]{0}', space=sflag, size = 0x4, scoped, tag = 'scoped memory for tpu_custom_call.1']
    #allocation7 [shape = 'u8[1024]{0}', space=vmem, size = 0x400, scoped, tag = 'output window, operand 0, single buffered']
    %7 = vsyncpa [#allocation3], 0
    %8 = vsyncpa [#allocation6], 0
    %9 = vsyncpa [#allocation4], 0
    // Predicated region
    $region2: #{tpu_custom_call.1} parent=1 // pred_check
      _
    $region3: #{tpu_custom_call.1} parent=1 // pred_check_branch
      %11 = sbr.rel (0) target = $region5
    $region4: #{tpu_custom_call.1} parent=1 // pred_region
      %s13 = ssub.s32 256, 256
      %14 = vsyncadd [#allocation3], %s13
      %s15 = sshll.u32 [#allocation2], 4
      %s16 = int_to_ptr.vmem [resolvable:$true] %s15
      %21 = dma.hbm_to_vmem [thread:$0]  %s0, 256, %s16, [#allocation3], 128, 128, 8
    $region5: #{tpu_custom_call.1} parent=1 // pred_fallthru
      _
    // Predicated region
    $region6: #{tpu_custom_call.1} parent=1 // pred_check
      _
    $region7: #{tpu_custom_call.1} parent=1 // pred_check_branch
      %23 = sbr.rel (0) target = $region9
    $region8: #{tpu_custom_call.1} parent=1 // pred_region
      %s25 = ssub.s32 7424, 7424
      %26 = vsyncadd [#allocation6], %s25
      %s27 = sshll.u32 [#allocation5], 4
      %s28 = int_to_ptr.vmem [resolvable:$true] %s27
      %33 = dma.hbm_to_vmem [thread:$0]  %s1, 7424, %s28, [#allocation6], 128, 128, 8
    $region9: #{tpu_custom_call.1} parent=1 // pred_fallthru
      _
    // Predicated region
    $region10: #{tpu_custom_call.1} parent=1 // pred_check
      _
    $region11: #{tpu_custom_call.1} parent=1 // pred_check_branch
      %35 = sbr.rel (0) target = $region13
    $region12: #{tpu_custom_call.1} parent=1 // pred_region
      %36 = dma.done [#allocation3], 256
    $region13: #{tpu_custom_call.1} parent=1 // pred_fallthru
      _
    // Predicated region
    $region14: #{tpu_custom_call.1} parent=1 // pred_check
      _
    $region15: #{tpu_custom_call.1} parent=1 // pred_check_branch
      %38 = sbr.rel (0) target = $region17
    $region16: #{tpu_custom_call.1} parent=1 // pred_region
      %39 = dma.done [#allocation6], 7424
    $region17: #{tpu_custom_call.1} parent=1 // pred_fallthru
      _
    %v40 = vld [vmem:[#allocation2 + $0x7] sm:$0x1]
    %v41 = vld [vmem:[#allocation2 + $0xf] sm:$0x1]
    %v42 = vld [vmem:[#allocation5 + $0x30] sm:$0xff]
    %v43 = vld [vmem:[#allocation5 + $0x38] sm:$0xff]
    %v44 = vld [vmem:[#allocation5 + $0x150] sm:$0x1]
    %v45 = vlaneseq
    %v46 = vshrl.u32 %v45, 7
    %v47 = vsub.s32 0, %v46
    %v48 = vrot.slane %v44, %v47
    %v51 = vrot.slane %v41, 7
    %vm52 = vcmask 1041409
    %v53 = vsel %vm52, %v51, %v40
    %vm54 = vcmask 130048
    %v55 = vsel %vm54, %v53, 0
    %57 = vmatprep.subr.mxu0 0.0
    %58 = vmatpush1.msra.mxu0 %v42
    %59 = vmatprep.subr.mxu0 0.0
    %60 = vmatpush1.msra.mxu0 %v43
    %61 = vmatprep.subr.mxu0 0.0
    %62 = vmatpush1.msra.mxu0 0.0
    %63 = vmatprep.subr.mxu0 0.0
    %64 = vmatpush1.msra.mxu0 0.0
    %65 = vmatprep.subr.mxu0 0.0
    %66 = vmatpush1.msra.mxu0 0.0
    %67 = vmatprep.subr.mxu0 0.0
    %68 = vmatpush1.msra.mxu0 0.0
    %69 = vmatprep.subr.mxu0 0.0
    %70 = vmatpush1.msra.mxu0 0.0
    %71 = vmatprep.subr.mxu0 0.0
    %72 = vmatpush1.msra.mxu0 0.0
    %73 = vmatprep.subr.mxu0 0.0
    %74 = vmatpush1.msra.mxu0 0.0
    %75 = vmatprep.subr.mxu0 0.0
    %76 = vmatpush1.msra.mxu0 0.0
    %77 = vmatprep.subr.mxu0 0.0
    %78 = vmatpush1.msra.mxu0 0.0
    %79 = vmatprep.subr.mxu0 0.0
    %80 = vmatpush1.msra.mxu0 0.0
    %81 = vmatprep.subr.mxu0 0.0
    %82 = vmatpush1.msra.mxu0 0.0
    %83 = vmatprep.subr.mxu0 0.0
    %84 = vmatpush1.msra.mxu0 0.0
    %85 = vmatprep.subr.mxu0 0.0
    %86 = vmatpush1.msra.mxu0 0.0
    %87 = vmatprep.subr.mxu0 0.0
    %88 = vmatpush1.msra.mxu0 0.0
    %89 = vmatprep.subr.mxu0 0.0
    %90 = vmatpush1.msra.mxu0 0.0
    %91 = vmatprep.subr.mxu0 0.0
    %92 = vmatpush1.msra.mxu0 0.0
    %93 = vmatprep.subr.mxu0 0.0
    %94 = vmatpush1.msra.mxu0 0.0
    %95 = vmatprep.subr.mxu0 0.0
    %96 = vmatpush1.msra.mxu0 0.0
    %97 = vmatprep.subr.mxu0 0.0
    %98 = vmatpush1.msra.mxu0 0.0
    %99 = vmatprep.subr.mxu0 0.0
    %100 = vmatpush1.msra.mxu0 0.0
    %101 = vmatprep.subr.mxu0 0.0
    %102 = vmatpush1.msra.mxu0 0.0
    %103 = vmatprep.subr.mxu0 0.0
    %104 = vmatpush1.msra.mxu0 0.0
    %105 = vmatprep.subr.mxu0 0.0
    %106 = vmatpush1.msra.mxu0 0.0
    %107 = vmatprep.subr.mxu0 0.0
    %108 = vmatpush1.msra.mxu0 0.0
    %109 = vmatprep.subr.mxu0 0.0
    %110 = vmatpush1.msra.mxu0 0.0
    %111 = vmatprep.subr.mxu0 0.0
    %112 = vmatpush1.msra.mxu0 0.0
    %113 = vmatprep.subr.mxu0 0.0
    %114 = vmatpush1.msra.mxu0 0.0
    %115 = vmatprep.subr.mxu0 0.0
    %116 = vmatpush1.msra.mxu0 0.0
    %117 = vmatprep.subr.mxu0 0.0
    %118 = vmatpush1.msra.mxu0 0.0
    %119 = vmatprep.subr.mxu0 0.0
    %120 = vmatpush1.msra.mxu0 0.0
    %121 = vmatprep.mubr.f32.mxu0 0.0
    %122 = vmatmul.mubr.f32.gmra.mrb[0].mxu0 %v55
    %v123 = vpop.f32.mrb[0].mxu0
    %v124 = vadd.f32 %v48, %v123
    %v125 = vpop.f32.mrb[0].mxu0
    %126 = vdwg.mxu0
    %v127 = vmax.f32 %v124, 0.0
    %v128 = vld [vmem:[#allocation5 + $0x40] sm:$0xff]
    %v129 = vld [vmem:[#allocation5 + $0x48] sm:$0xff]
    %v130 = vld [vmem:[#allocation5 + $0x50] sm:$0xff]
    %v131 = vld [vmem:[#allocation5 + $0x58] sm:$0xff]
    %v132 = vld [vmem:[#allocation5 + $0x160] sm:$0x1]
    %v133 = vlaneseq
    %v134 = vshrl.u32 %v133, 7
    %v135 = vsub.s32 0, %v134
    %v136 = vrot.slane %v132, %v135
    %vm137 = vcmask 261120
    %v139 = vsel %vm137, %v127, 0
    %141 = vmatprep.subr.mxu0 0.0
    %142 = vmatpush1.msra.mxu0 %v128
    %143 = vmatprep.subr.mxu0 0.0
    %144 = vmatpush1.msra.mxu0 %v129
    %145 = vmatprep.subr.mxu0 0.0
    %146 = vmatpush1.msra.mxu0 %v130
    %147 = vmatprep.subr.mxu0 0.0
    %148 = vmatpush1.msra.mxu0 %v131
    %149 = vmatprep.subr.mxu0 0.0
    %150 = vmatpush1.msra.mxu0 0.0
    %151 = vmatprep.subr.mxu0 0.0
    %152 = vmatpush1.msra.mxu0 0.0
    %153 = vmatprep.subr.mxu0 0.0
    %154 = vmatpush1.msra.mxu0 0.0
    %155 = vmatprep.subr.mxu0 0.0
    %156 = vmatpush1.msra.mxu0 0.0
    %157 = vmatprep.subr.mxu0 0.0
    %158 = vmatpush1.msra.mxu0 0.0
    %159 = vmatprep.subr.mxu0 0.0
    %160 = vmatpush1.msra.mxu0 0.0
    %161 = vmatprep.subr.mxu0 0.0
    %162 = vmatpush1.msra.mxu0 0.0
    %163 = vmatprep.subr.mxu0 0.0
    %164 = vmatpush1.msra.mxu0 0.0
    %165 = vmatprep.subr.mxu0 0.0
    %166 = vmatpush1.msra.mxu0 0.0
    %167 = vmatprep.subr.mxu0 0.0
    %168 = vmatpush1.msra.mxu0 0.0
    %169 = vmatprep.subr.mxu0 0.0
    %170 = vmatpush1.msra.mxu0 0.0
    %171 = vmatprep.subr.mxu0 0.0
    %172 = vmatpush1.msra.mxu0 0.0
    %173 = vmatprep.subr.mxu0 0.0
    %174 = vmatpush1.msra.mxu0 0.0
    %175 = vmatprep.subr.mxu0 0.0
    %176 = vmatpush1.msra.mxu0 0.0
    %177 = vmatprep.subr.mxu0 0.0
    %178 = vmatpush1.msra.mxu0 0.0
    %179 = vmatprep.subr.mxu0 0.0
    %180 = vmatpush1.msra.mxu0 0.0
    %181 = vmatprep.subr.mxu0 0.0
    %182 = vmatpush1.msra.mxu0 0.0
    %183 = vmatprep.subr.mxu0 0.0
    %184 = vmatpush1.msra.mxu0 0.0
    %185 = vmatprep.subr.mxu0 0.0
    %186 = vmatpush1.msra.mxu0 0.0
    %187 = vmatprep.subr.mxu0 0.0
    %188 = vmatpush1.msra.mxu0 0.0
    %189 = vmatprep.subr.mxu0 0.0
    %190 = vmatpush1.msra.mxu0 0.0
    %191 = vmatprep.subr.mxu0 0.0
    %192 = vmatpush1.msra.mxu0 0.0
    %193 = vmatprep.subr.mxu0 0.0
    %194 = vmatpush1.msra.mxu0 0.0
    %195 = vmatprep.subr.mxu0 0.0
    %196 = vmatpush1.msra.mxu0 0.0
    %197 = vmatprep.subr.mxu0 0.0
    %198 = vmatpush1.msra.mxu0 0.0
    %199 = vmatprep.subr.mxu0 0.0
    %200 = vmatpush1.msra.mxu0 0.0
    %201 = vmatprep.subr.mxu0 0.0
    %202 = vmatpush1.msra.mxu0 0.0
    %203 = vmatprep.subr.mxu0 0.0
    %204 = vmatpush1.msra.mxu0 0.0
    %205 = vmatprep.mubr.f32.mxu0 0.0
    %206 = vmatmul.mubr.f32.gmra.mrb[0].mxu0 %v139
    %v207 = vpop.f32.mrb[0].mxu0
    %v208 = vadd.f32 %v136, %v207
    %v209 = vpop.f32.mrb[0].mxu0
    %210 = vdwg.mxu0
    %v211 = vmax.f32 %v208, 0.0
    %v212 = vld [vmem:[#allocation5 + $0x60] sm:$0xff]
    %v213 = vld [vmem:[#allocation5 + $0x68] sm:$0xff]
    %v214 = vld [vmem:[#allocation5 + $0x70] sm:$0xff]
    %v215 = vld [vmem:[#allocation5 + $0x78] sm:$0xff]
    %v216 = vld [vmem:[#allocation5 + $0x170] sm:$0x1]
    %v217 = vlaneseq
    %v218 = vshrl.u32 %v217, 7
    %v219 = vsub.s32 0, %v218
    %v220 = vrot.slane %v216, %v219
    %v222 = vsel %vm137, %v211, 0
    %224 = vmatprep.subr.mxu0 0.0
    %225 = vmatpush1.msra.mxu0 %v212
    %226 = vmatprep.subr.mxu0 0.0
    %227 = vmatpush1.msra.mxu0 %v213
    %228 = vmatprep.subr.mxu0 0.0
    %229 = vmatpush1.msra.mxu0 %v214
    %230 = vmatprep.subr.mxu0 0.0
    %231 = vmatpush1.msra.mxu0 %v215
    %232 = vmatprep.subr.mxu0 0.0
    %233 = vmatpush1.msra.mxu0 0.0
    %234 = vmatprep.subr.mxu0 0.0
    %235 = vmatpush1.msra.mxu0 0.0
    %236 = vmatprep.subr.mxu0 0.0
    %237 = vmatpush1.msra.mxu0 0.0
    %238 = vmatprep.subr.mxu0 0.0
    %239 = vmatpush1.msra.mxu0 0.0
    %240 = vmatprep.subr.mxu0 0.0
    %241 = vmatpush1.msra.mxu0 0.0
    %242 = vmatprep.subr.mxu0 0.0
    %243 = vmatpush1.msra.mxu0 0.0
    %244 = vmatprep.subr.mxu0 0.0
    %245 = vmatpush1.msra.mxu0 0.0
    %246 = vmatprep.subr.mxu0 0.0
    %247 = vmatpush1.msra.mxu0 0.0
    %248 = vmatprep.subr.mxu0 0.0
    %249 = vmatpush1.msra.mxu0 0.0
    %250 = vmatprep.subr.mxu0 0.0
    %251 = vmatpush1.msra.mxu0 0.0
    %252 = vmatprep.subr.mxu0 0.0
    %253 = vmatpush1.msra.mxu0 0.0
    %254 = vmatprep.subr.mxu0 0.0
    %255 = vmatpush1.msra.mxu0 0.0
    %256 = vmatprep.subr.mxu0 0.0
    %257 = vmatpush1.msra.mxu0 0.0
    %258 = vmatprep.subr.mxu0 0.0
    %259 = vmatpush1.msra.mxu0 0.0
    %260 = vmatprep.subr.mxu0 0.0
    %261 = vmatpush1.msra.mxu0 0.0
    %262 = vmatprep.subr.mxu0 0.0
    %263 = vmatpush1.msra.mxu0 0.0
    %264 = vmatprep.subr.mxu0 0.0
    %265 = vmatpush1.msra.mxu0 0.0
    %266 = vmatprep.subr.mxu0 0.0
    %267 = vmatpush1.msra.mxu0 0.0
    %268 = vmatprep.subr.mxu0 0.0
    %269 = vmatpush1.msra.mxu0 0.0
    %270 = vmatprep.subr.mxu0 0.0
    %271 = vmatpush1.msra.mxu0 0.0
    %272 = vmatprep.subr.mxu0 0.0
    %273 = vmatpush1.msra.mxu0 0.0
    %274 = vmatprep.subr.mxu0 0.0
    %275 = vmatpush1.msra.mxu0 0.0
    %276 = vmatprep.subr.mxu0 0.0
    %277 = vmatpush1.msra.mxu0 0.0
    %278 = vmatprep.subr.mxu0 0.0
    %279 = vmatpush1.msra.mxu0 0.0
    %280 = vmatprep.subr.mxu0 0.0
    %281 = vmatpush1.msra.mxu0 0.0
    %282 = vmatprep.subr.mxu0 0.0
    %283 = vmatpush1.msra.mxu0 0.0
    %284 = vmatprep.subr.mxu0 0.0
    %285 = vmatpush1.msra.mxu0 0.0
    %286 = vmatprep.subr.mxu0 0.0
    %287 = vmatpush1.msra.mxu0 0.0
    %288 = vmatprep.mubr.f32.mxu0 0.0
    %289 = vmatmul.mubr.f32.gmra.mrb[0].mxu0 %v222
    %v290 = vpop.f32.mrb[0].mxu0
    %v291 = vadd.f32 %v220, %v290
    %v292 = vpop.f32.mrb[0].mxu0
    %293 = vdwg.mxu0
    %v294 = vtanh.pop %v291
    %v295 = vld [vmem:[#allocation5] sm:$0xff]
    %v296 = vld [vmem:[#allocation5 + $0x8] sm:$0xff]
    %v297 = vld [vmem:[#allocation5 + $0x10] sm:$0xff]
    %v298 = vld [vmem:[#allocation5 + $0x18] sm:$0xff]
    %v299 = vld [vmem:[#allocation5 + $0x20] sm:$0xff]
    %v300 = vld [vmem:[#allocation5 + $0x28] sm:$0xff]
    %v301 = vld [vmem:[#allocation5 + $0x140] sm:$0x1]
    %v302 = vld [vmem:[#allocation2] sm:$0x1]
    %v303 = vld [vmem:[#allocation2 + $0x8] sm:$0x1]
    %v304 = vlaneseq
    %v305 = vshrl.u32 %v304, 7
    %v306 = vsub.s32 0, %v305
    %v307 = vrot.slane %v301, %v306
    %v310 = vrot.slane %v303, 7
    %v311 = vsel %vm52, %v310, %v302
    %v312 = vsel %vm54, %v311, 0
    %314 = vmatprep.subr.mxu0 0.0
    %315 = vmatpush1.msra.mxu0 %v295
    %316 = vmatprep.subr.mxu0 0.0
    %317 = vmatpush1.msra.mxu0 %v296
    %318 = vmatprep.subr.mxu0 0.0
    %319 = vmatpush1.msra.mxu0 0.0
    %320 = vmatprep.subr.mxu0 0.0
    %321 = vmatpush1.msra.mxu0 0.0
    %322 = vmatprep.subr.mxu0 0.0
    %323 = vmatpush1.msra.mxu0 0.0
    %324 = vmatprep.subr.mxu0 0.0
    %325 = vmatpush1.msra.mxu0 0.0
    %326 = vmatprep.subr.mxu0 0.0
    %327 = vmatpush1.msra.mxu0 0.0
    %328 = vmatprep.subr.mxu0 0.0
    %329 = vmatpush1.msra.mxu0 0.0
    %330 = vmatprep.subr.mxu0 0.0
    %331 = vmatpush1.msra.mxu0 0.0
    %332 = vmatprep.subr.mxu0 0.0
    %333 = vmatpush1.msra.mxu0 0.0
    %334 = vmatprep.subr.mxu0 0.0
    %335 = vmatpush1.msra.mxu0 0.0
    %336 = vmatprep.subr.mxu0 0.0
    %337 = vmatpush1.msra.mxu0 0.0
    %338 = vmatprep.subr.mxu0 0.0
    %339 = vmatpush1.msra.mxu0 0.0
    %340 = vmatprep.subr.mxu0 0.0
    %341 = vmatpush1.msra.mxu0 0.0
    %342 = vmatprep.subr.mxu0 0.0
    %343 = vmatpush1.msra.mxu0 0.0
    %344 = vmatprep.subr.mxu0 0.0
    %345 = vmatpush1.msra.mxu0 0.0
    %346 = vmatprep.subr.mxu0 0.0
    %347 = vmatpush1.msra.mxu0 0.0
    %348 = vmatprep.subr.mxu0 0.0
    %349 = vmatpush1.msra.mxu0 0.0
    %350 = vmatprep.subr.mxu0 0.0
    %351 = vmatpush1.msra.mxu0 0.0
    %352 = vmatprep.subr.mxu0 0.0
    %353 = vmatpush1.msra.mxu0 0.0
    %354 = vmatprep.subr.mxu0 0.0
    %355 = vmatpush1.msra.mxu0 0.0
    %356 = vmatprep.subr.mxu0 0.0
    %357 = vmatpush1.msra.mxu0 0.0
    %358 = vmatprep.subr.mxu0 0.0
    %359 = vmatpush1.msra.mxu0 0.0
    %360 = vmatprep.subr.mxu0 0.0
    %361 = vmatpush1.msra.mxu0 0.0
    %362 = vmatprep.subr.mxu0 0.0
    %363 = vmatpush1.msra.mxu0 0.0
    %364 = vmatprep.subr.mxu0 0.0
    %365 = vmatpush1.msra.mxu0 0.0
    %366 = vmatprep.subr.mxu0 0.0
    %367 = vmatpush1.msra.mxu0 0.0
    %368 = vmatprep.subr.mxu0 0.0
    %369 = vmatpush1.msra.mxu0 0.0
    %370 = vmatprep.subr.mxu0 0.0
    %371 = vmatpush1.msra.mxu0 0.0
    %372 = vmatprep.subr.mxu0 0.0
    %373 = vmatpush1.msra.mxu0 0.0
    %374 = vmatprep.subr.mxu0 0.0
    %375 = vmatpush1.msra.mxu0 0.0
    %376 = vmatprep.subr.mxu0 0.0
    %377 = vmatpush1.msra.mxu0 0.0
    %378 = vmatprep.mubr.f32.mxu0 0.0
    %379 = vmatmul.mubr.f32.gmra.mrb[0].mxu0 %v312
    %v380 = vpop.f32.mrb[0].mxu0
    %v381 = vadd.f32 %v307, %v380
    %v382 = vpop.f32.mrb[0].mxu0
    %383 = vdwg.mxu0
    %v385 = vsel %vm137, 0.0, 0
    %387 = vmatprep.subr.mxu0 0.0
    %388 = vmatpush1.msra.mxu0 %v297
    %389 = vmatprep.subr.mxu0 0.0
    %390 = vmatpush1.msra.mxu0 %v298
    %391 = vmatprep.subr.mxu0 0.0
    %392 = vmatpush1.msra.mxu0 %v299
    %393 = vmatprep.subr.mxu0 0.0
    %394 = vmatpush1.msra.mxu0 %v300
    %395 = vmatprep.subr.mxu0 0.0
    %396 = vmatpush1.msra.mxu0 0.0
    %397 = vmatprep.subr.mxu0 0.0
    %398 = vmatpush1.msra.mxu0 0.0
    %399 = vmatprep.subr.mxu0 0.0
    %400 = vmatpush1.msra.mxu0 0.0
    %401 = vmatprep.subr.mxu0 0.0
    %402 = vmatpush1.msra.mxu0 0.0
    %403 = vmatprep.subr.mxu0 0.0
    %404 = vmatpush1.msra.mxu0 0.0
    %405 = vmatprep.subr.mxu0 0.0
    %406 = vmatpush1.msra.mxu0 0.0
    %407 = vmatprep.subr.mxu0 0.0
    %408 = vmatpush1.msra.mxu0 0.0
    %409 = vmatprep.subr.mxu0 0.0
    %410 = vmatpush1.msra.mxu0 0.0
    %411 = vmatprep.subr.mxu0 0.0
    %412 = vmatpush1.msra.mxu0 0.0
    %413 = vmatprep.subr.mxu0 0.0
    %414 = vmatpush1.msra.mxu0 0.0
    %415 = vmatprep.subr.mxu0 0.0
    %416 = vmatpush1.msra.mxu0 0.0
    %417 = vmatprep.subr.mxu0 0.0
    %418 = vmatpush1.msra.mxu0 0.0
    %419 = vmatprep.subr.mxu0 0.0
    %420 = vmatpush1.msra.mxu0 0.0
    %421 = vmatprep.subr.mxu0 0.0
    %422 = vmatpush1.msra.mxu0 0.0
    %423 = vmatprep.subr.mxu0 0.0
    %424 = vmatpush1.msra.mxu0 0.0
    %425 = vmatprep.subr.mxu0 0.0
    %426 = vmatpush1.msra.mxu0 0.0
    %427 = vmatprep.subr.mxu0 0.0
    %428 = vmatpush1.msra.mxu0 0.0
    %429 = vmatprep.subr.mxu0 0.0
    %430 = vmatpush1.msra.mxu0 0.0
    %431 = vmatprep.subr.mxu0 0.0
    %432 = vmatpush1.msra.mxu0 0.0
    %433 = vmatprep.subr.mxu0 0.0
    %434 = vmatpush1.msra.mxu0 0.0
    %435 = vmatprep.subr.mxu0 0.0
    %436 = vmatpush1.msra.mxu0 0.0
    %437 = vmatprep.subr.mxu0 0.0
    %438 = vmatpush1.msra.mxu0 0.0
    %439 = vmatprep.subr.mxu0 0.0
    %440 = vmatpush1.msra.mxu0 0.0
    %441 = vmatprep.subr.mxu0 0.0
    %442 = vmatpush1.msra.mxu0 0.0
    %443 = vmatprep.subr.mxu0 0.0
    %444 = vmatpush1.msra.mxu0 0.0
    %445 = vmatprep.subr.mxu0 0.0
    %446 = vmatpush1.msra.mxu0 0.0
    %447 = vmatprep.subr.mxu0 0.0
    %448 = vmatpush1.msra.mxu0 0.0
    %449 = vmatprep.subr.mxu0 0.0
    %450 = vmatpush1.msra.mxu0 0.0
    %451 = vmatprep.mubr.f32.mxu0 0.0
    %452 = vmatmul.mubr.f32.gmra.mrb[0].mxu0 %v385
    %v453 = vpop.f32.mrb[0].mxu0
    %v454 = vadd.f32 0.0, %v453
    %v455 = vpop.f32.mrb[0].mxu0
    %456 = vdwg.mxu0
    %v457 = vadd.f32 %v381, %v454
    %v458 = vxor.u32 %v457, 2147483648
    %v459 = vmul.f32 %v458, 1.442695
    %v460 = vpow.pop %v459
    %v461 = vadd.f32 %v460, 1.0
    %v462 = vrcp.pop %v461
    %v463 = vmul.f32 1.0, %v462
    %v464 = vmul.f32 %v463, 2.0
    %v465 = vsub.f32 %v464, 1.0
    %v466 = vmul.f32 %v463, 0.0
    %468 = vrot.lane.b32.xlu0 %v465, 64
    %v469 = vpop.permute.xlu0 %468
    %v471 = vmul.f32 %v463, %v469
    %473 = vrot.lane.b32.xlu0 %v471, 32
    %v474 = vpop.permute.xlu0 %473
    %v476 = vadd.f32 %v466, %v474
    %v477 = vtanh.pop %v476
    %479 = vrot.lane.b32.xlu0 %v477, 64
    %v480 = vpop.permute.xlu0 %479
    %v482 = vmul.f32 %v463, %v480
    %v483 = vld [vmem:[#allocation2 + $0x1] sm:$0x1]
    %v484 = vld [vmem:[#allocation2 + $0x9] sm:$0x1]
    %v487 = vrot.slane %v484, 7
    %v488 = vsel %vm52, %v487, %v483
    %v489 = vsel %vm54, %v488, 0
    %491 = vmatprep.subr.mxu0 0.0
    %492 = vmatpush1.msra.mxu0 %v295
    %493 = vmatprep.subr.mxu0 0.0
    %494 = vmatpush1.msra.mxu0 %v296
    %495 = vmatprep.subr.mxu0 0.0
    %496 = vmatpush1.msra.mxu0 0.0
    %497 = vmatprep.subr.mxu0 0.0
    %498 = vmatpush1.msra.mxu0 0.0
    %499 = vmatprep.subr.mxu0 0.0
    %500 = vmatpush1.msra.mxu0 0.0
    %501 = vmatprep.subr.mxu0 0.0
    %502 = vmatpush1.msra.mxu0 0.0
    %503 = vmatprep.subr.mxu0 0.0
    %504 = vmatpush1.msra.mxu0 0.0
    %505 = vmatprep.subr.mxu0 0.0
    %506 = vmatpush1.msra.mxu0 0.0
    %507 = vmatprep.subr.mxu0 0.0
    %508 = vmatpush1.msra.mxu0 0.0
    %509 = vmatprep.subr.mxu0 0.0
    %510 = vmatpush1.msra.mxu0 0.0
    %511 = vmatprep.subr.mxu0 0.0
    %512 = vmatpush1.msra.mxu0 0.0
    %513 = vmatprep.subr.mxu0 0.0
    %514 = vmatpush1.msra.mxu0 0.0
    %515 = vmatprep.subr.mxu0 0.0
    %516 = vmatpush1.msra.mxu0 0.0
    %517 = vmatprep.subr.mxu0 0.0
    %518 = vmatpush1.msra.mxu0 0.0
    %519 = vmatprep.subr.mxu0 0.0
    %520 = vmatpush1.msra.mxu0 0.0
    %521 = vmatprep.subr.mxu0 0.0
    %522 = vmatpush1.msra.mxu0 0.0
    %523 = vmatprep.subr.mxu0 0.0
    %524 = vmatpush1.msra.mxu0 0.0
    %525 = vmatprep.subr.mxu0 0.0
    %526 = vmatpush1.msra.mxu0 0.0
    %527 = vmatprep.subr.mxu0 0.0
    %528 = vmatpush1.msra.mxu0 0.0
    %529 = vmatprep.subr.mxu0 0.0
    %530 = vmatpush1.msra.mxu0 0.0
    %531 = vmatprep.subr.mxu0 0.0
    %532 = vmatpush1.msra.mxu0 0.0
    %533 = vmatprep.subr.mxu0 0.0
    %534 = vmatpush1.msra.mxu0 0.0
    %535 = vmatprep.subr.mxu0 0.0
    %536 = vmatpush1.msra.mxu0 0.0
    %537 = vmatprep.subr.mxu0 0.0
    %538 = vmatpush1.msra.mxu0 0.0
    %539 = vmatprep.subr.mxu0 0.0
    %540 = vmatpush1.msra.mxu0 0.0
    %541 = vmatprep.subr.mxu0 0.0
    %542 = vmatpush1.msra.mxu0 0.0
    %543 = vmatprep.subr.mxu0 0.0
    %544 = vmatpush1.msra.mxu0 0.0
    %545 = vmatprep.subr.mxu0 0.0
    %546 = vmatpush1.msra.mxu0 0.0
    %547 = vmatprep.subr.mxu0 0.0
    %548 = vmatpush1.msra.mxu0 0.0
    %549 = vmatprep.subr.mxu0 0.0
    %550 = vmatpush1.msra.mxu0 0.0
    %551 = vmatprep.subr.mxu0 0.0
    %552 = vmatpush1.msra.mxu0 0.0
    %553 = vmatprep.subr.mxu0 0.0
    %554 = vmatpush1.msra.mxu0 0.0
    %555 = vmatprep.mubr.f32.mxu0 0.0
    %556 = vmatmul.mubr.f32.gmra.mrb[0].mxu0 %v489
    %v557 = vpop.f32.mrb[0].mxu0
    %v558 = vadd.f32 %v307, %v557
    %v559 = vpop.f32.mrb[0].mxu0
    %560 = vdwg.mxu0
    %562 = vrot.lane.b32.xlu0 %v482, 32
    %v563 = vpop.permute.xlu0 %562
    %v564 = vsel %vm137, %v563, 0
    %566 = vmatprep.subr.mxu0 0.0
    %567 = vmatpush1.msra.mxu0 %v297
    %568 = vmatprep.subr.mxu0 0.0
    %569 = vmatpush1.msra.mxu0 %v298
    %570 = vmatprep.subr.mxu0 0.0
    %571 = vmatpush1.msra.mxu0 %v299
    %572 = vmatprep.subr.mxu0 0.0
    %573 = vmatpush1.msra.mxu0 %v300
    %574 = vmatprep.subr.mxu0 0.0
    %575 = vmatpush1.msra.mxu0 0.0
    %576 = vmatprep.subr.mxu0 0.0
    %577 = vmatpush1.msra.mxu0 0.0
    %578 = vmatprep.subr.mxu0 0.0
    %579 = vmatpush1.msra.mxu0 0.0
    %580 = vmatprep.subr.mxu0 0.0
    %581 = vmatpush1.msra.mxu0 0.0
    %582 = vmatprep.subr.mxu0 0.0
    %583 = vmatpush1.msra.mxu0 0.0
    %584 = vmatprep.subr.mxu0 0.0
    %585 = vmatpush1.msra.mxu0 0.0
    %586 = vmatprep.subr.mxu0 0.0
    %587 = vmatpush1.msra.mxu0 0.0
    %588 = vmatprep.subr.mxu0 0.0
    %589 = vmatpush1.msra.mxu0 0.0
    %590 = vmatprep.subr.mxu0 0.0
    %591 = vmatpush1.msra.mxu0 0.0
    %592 = vmatprep.subr.mxu0 0.0
    %593 = vmatpush1.msra.mxu0 0.0
    %594 = vmatprep.subr.mxu0 0.0
    %595 = vmatpush1.msra.mxu0 0.0
    %596 = vmatprep.subr.mxu0 0.0
    %597 = vmatpush1.msra.mxu0 0.0
    %598 = vmatprep.subr.mxu0 0.0
    %599 = vmatpush1.msra.mxu0 0.0
    %600 = vmatprep.subr.mxu0 0.0
    %601 = vmatpush1.msra.mxu0 0.0
    %602 = vmatprep.subr.mxu0 0.0
    %603 = vmatpush1.msra.mxu0 0.0
    %604 = vmatprep.subr.mxu0 0.0
    %605 = vmatpush1.msra.mxu0 0.0
    %606 = vmatprep.subr.mxu0 0.0
    %607 = vmatpush1.msra.mxu0 0.0
    %608 = vmatprep.subr.mxu0 0.0
    %609 = vmatpush1.msra.mxu0 0.0
    %610 = vmatprep.subr.mxu0 0.0
    %611 = vmatpush1.msra.mxu0 0.0
    %612 = vmatprep.subr.mxu0 0.0
    %613 = vmatpush1.msra.mxu0 0.0
    %614 = vmatprep.subr.mxu0 0.0
    %615 = vmatpush1.msra.mxu0 0.0
    %616 = vmatprep.subr.mxu0 0.0
    %617 = vmatpush1.msra.mxu0 0.0
    %618 = vmatprep.subr.mxu0 0.0
    %619 = vmatpush1.msra.mxu0 0.0
    %620 = vmatprep.subr.mxu0 0.0
    %621 = vmatpush1.msra.mxu0 0.0
    %622 = vmatprep.subr.mxu0 0.0
    %623 = vmatpush1.msra.mxu0 0.0
    %624 = vmatprep.subr.mxu0 0.0
    %625 = vmatpush1.msra.mxu0 0.0
    %626 = vmatprep.subr.mxu0 0.0
    %627 = vmatpush1.msra.mxu0 0.0
    %628 = vmatprep.subr.mxu0 0.0
    %629 = vmatpush1.msra.mxu0 0.0
    %630 = vmatprep.mubr.f32.mxu0 0.0
    %631 = vmatmul.mubr.f32.gmra.mrb[0].mxu0 %v564
    %v632 = vpop.f32.mrb[0].mxu0
    %v633 = vadd.f32 0.0, %v632
    %v634 = vpop.f32.mrb[0].mxu0
    %635 = vdwg.mxu0
    %v636 = vadd.f32 %v558, %v633
    %v637 = vxor.u32 %v636, 2147483648
    %v638 = vmul.f32 %v637, 1.442695
    %v639 = vpow.pop %v638
    %v640 = vadd.f32 %v639, 1.0
    %v641 = vrcp.pop %v640
    %v642 = vmul.f32 1.0, %v641
    %v643 = vmul.f32 %v642, 2.0
    %v644 = vsub.f32 %v643, 1.0
    %v645 = vmul.f32 %v642, %v476
    %647 = vrot.lane.b32.xlu0 %v644, 64
    %v648 = vpop.permute.xlu0 %647
    %v650 = vmul.f32 %v642, %v648
    %652 = vrot.lane.b32.xlu0 %v650, 32
    %v653 = vpop.permute.xlu0 %652
    %v655 = vadd.f32 %v645, %v653
    %v656 = vtanh.pop %v655
    %658 = vrot.lane.b32.xlu0 %v656, 64
    %v659 = vpop.permute.xlu0 %658
    %v661 = vmul.f32 %v642, %v659
    %v662 = vld [vmem:[#allocation2 + $0x2] sm:$0x1]
    %v663 = vld [vmem:[#allocation2 + $0xa] sm:$0x1]
    %v666 = vrot.slane %v663, 7
    %v667 = vsel %vm52, %v666, %v662
    %v668 = vsel %vm54, %v667, 0
    %670 = vmatprep.subr.mxu0 0.0
    %671 = vmatpush1.msra.mxu0 %v295
    %672 = vmatprep.subr.mxu0 0.0
    %673 = vmatpush1.msra.mxu0 %v296
    %674 = vmatprep.subr.mxu0 0.0
    %675 = vmatpush1.msra.mxu0 0.0
    %676 = vmatprep.subr.mxu0 0.0
    %677 = vmatpush1.msra.mxu0 0.0
    %678 = vmatprep.subr.mxu0 0.0
    %679 = vmatpush1.msra.mxu0 0.0
    %680 = vmatprep.subr.mxu0 0.0
    %681 = vmatpush1.msra.mxu0 0.0
    %682 = vmatprep.subr.mxu0 0.0
    %683 = vmatpush1.msra.mxu0 0.0
    %684 = vmatprep.subr.mxu0 0.0
    %685 = vmatpush1.msra.mxu0 0.0
    %686 = vmatprep.subr.mxu0 0.0
    %687 = vmatpush1.msra.mxu0 0.0
    %688 = vmatprep.subr.mxu0 0.0
    %689 = vmatpush1.msra.mxu0 0.0
    %690 = vmatprep.subr.mxu0 0.0
    %691 = vmatpush1.msra.mxu0 0.0
    %692 = vmatprep.subr.mxu0 0.0
    %693 = vmatpush1.msra.mxu0 0.0
    %694 = vmatprep.subr.mxu0 0.0
    %695 = vmatpush1.msra.mxu0 0.0
    %696 = vmatprep.subr.mxu0 0.0
    %697 = vmatpush1.msra.mxu0 0.0
    %698 = vmatprep.subr.mxu0 0.0
    %699 = vmatpush1.msra.mxu0 0.0
    %700 = vmatprep.subr.mxu0 0.0
    %701 = vmatpush1.msra.mxu0 0.0
    %702 = vmatprep.subr.mxu0 0.0
    %703 = vmatpush1.msra.mxu0 0.0
    %704 = vmatprep.subr.mxu0 0.0
    %705 = vmatpush1.msra.mxu0 0.0
    %706 = vmatprep.subr.mxu0 0.0
    %707 = vmatpush1.msra.mxu0 0.0
    %708 = vmatprep.subr.mxu0 0.0
    %709 = vmatpush1.msra.mxu0 0.0
    %710 = vmatprep.subr.mxu0 0.0
    %711 = vmatpush1.msra.mxu0 0.0
    %712 = vmatprep.subr.mxu0 0.0
    %713 = vmatpush1.msra.mxu0 0.0
    %714 = vmatprep.subr.mxu0 0.0
    %715 = vmatpush1.msra.mxu0 0.0
    %716 = vmatprep.subr.mxu0 0.0
    %717 = vmatpush1.msra.mxu0 0.0
    %718 = vmatprep.subr.mxu0 0.0
    %719 = vmatpush1.msra.mxu0 0.0
    %720 = vmatprep.subr.mxu0 0.0
    %721 = vmatpush1.msra.mxu0 0.0
    %722 = vmatprep.subr.mxu0 0.0
    %723 = vmatpush1.msra.mxu0 0.0
    %724 = vmatprep.subr.mxu0 0.0
    %725 = vmatpush1.msra.mxu0 0.0
    %726 = vmatprep.subr.mxu0 0.0
    %727 = vmatpush1.msra.mxu0 0.0
    %728 = vmatprep.subr.mxu0 0.0
    %729 = vmatpush1.msra.mxu0 0.0
    %730 = vmatprep.subr.mxu0 0.0
    %731 = vmatpush1.msra.mxu0 0.0
    %732 = vmatprep.subr.mxu0 0.0
    %733 = vmatpush1.msra.mxu0 0.0
    %734 = vmatprep.mubr.f32.mxu0 0.0
    %735 = vmatmul.mubr.f32.gmra.mrb[0].mxu0 %v668
    %v736 = vpop.f32.mrb[0].mxu0
    %v737 = vadd.f32 %v307, %v736
    %v738 = vpop.f32.mrb[0].mxu0
    %739 = vdwg.mxu0
    %741 = vrot.lane.b32.xlu0 %v661, 32
    %v742 = vpop.permute.xlu0 %741
    %v743 = vsel %vm137, %v742, 0
    %745 = vmatprep.subr.mxu0 0.0
    %746 = vmatpush1.msra.mxu0 %v297
    %747 = vmatprep.subr.mxu0 0.0
    %748 = vmatpush1.msra.mxu0 %v298
    %749 = vmatprep.subr.mxu0 0.0
    %750 = vmatpush1.msra.mxu0 %v299
    %751 = vmatprep.subr.mxu0 0.0
    %752 = vmatpush1.msra.mxu0 %v300
    %753 = vmatprep.subr.mxu0 0.0
    %754 = vmatpush1.msra.mxu0 0.0
    %755 = vmatprep.subr.mxu0 0.0
    %756 = vmatpush1.msra.mxu0 0.0
    %757 = vmatprep.subr.mxu0 0.0
    %758 = vmatpush1.msra.mxu0 0.0
    %759 = vmatprep.subr.mxu0 0.0
    %760 = vmatpush1.msra.mxu0 0.0
    %761 = vmatprep.subr.mxu0 0.0
    %762 = vmatpush1.msra.mxu0 0.0
    %763 = vmatprep.subr.mxu0 0.0
    %764 = vmatpush1.msra.mxu0 0.0
    %765 = vmatprep.subr.mxu0 0.0
    %766 = vmatpush1.msra.mxu0 0.0
    %767 = vmatprep.subr.mxu0 0.0
    %768 = vmatpush1.msra.mxu0 0.0
    %769 = vmatprep.subr.mxu0 0.0
    %770 = vmatpush1.msra.mxu0 0.0
    %771 = vmatprep.subr.mxu0 0.0
    %772 = vmatpush1.msra.mxu0 0.0
    %773 = vmatprep.subr.mxu0 0.0
    %774 = vmatpush1.msra.mxu0 0.0
    %775 = vmatprep.subr.mxu0 0.0
    %776 = vmatpush1.msra.mxu0 0.0
    %777 = vmatprep.subr.mxu0 0.0
    %778 = vmatpush1.msra.mxu0 0.0
    %779 = vmatprep.subr.mxu0 0.0
    %780 = vmatpush1.msra.mxu0 0.0
    %781 = vmatprep.subr.mxu0 0.0
    %782 = vmatpush1.msra.mxu0 0.0
    %783 = vmatprep.subr.mxu0 0.0
    %784 = vmatpush1.msra.mxu0 0.0
    %785 = vmatprep.subr.mxu0 0.0
    %786 = vmatpush1.msra.mxu0 0.0
    %787 = vmatprep.subr.mxu0 0.0
    %788 = vmatpush1.msra.mxu0 0.0
    %789 = vmatprep.subr.mxu0 0.0
    %790 = vmatpush1.msra.mxu0 0.0
    %791 = vmatprep.subr.mxu0 0.0
    %792 = vmatpush1.msra.mxu0 0.0
    %793 = vmatprep.subr.mxu0 0.0
    %794 = vmatpush1.msra.mxu0 0.0
    %795 = vmatprep.subr.mxu0 0.0
    %796 = vmatpush1.msra.mxu0 0.0
    %797 = vmatprep.subr.mxu0 0.0
    %798 = vmatpush1.msra.mxu0 0.0
    %799 = vmatprep.subr.mxu0 0.0
    %800 = vmatpush1.msra.mxu0 0.0
    %801 = vmatprep.subr.mxu0 0.0
    %802 = vmatpush1.msra.mxu0 0.0
    %803 = vmatprep.subr.mxu0 0.0
    %804 = vmatpush1.msra.mxu0 0.0
    %805 = vmatprep.subr.mxu0 0.0
    %806 = vmatpush1.msra.mxu0 0.0
    %807 = vmatprep.subr.mxu0 0.0
    %808 = vmatpush1.msra.mxu0 0.0
    %809 = vmatprep.mubr.f32.mxu0 0.0
    %810 = vmatmul.mubr.f32.gmra.mrb[0].mxu0 %v743
    %v811 = vpop.f32.mrb[0].mxu0
    %v812 = vadd.f32 0.0, %v811
    %v813 = vpop.f32.mrb[0].mxu0
    %814 = vdwg.mxu0
    %v815 = vadd.f32 %v737, %v812
    %v816 = vxor.u32 %v815, 2147483648
    %v817 = vmul.f32 %v816, 1.442695
    %v818 = vpow.pop %v817
    %v819 = vadd.f32 %v818, 1.0
    %v820 = vrcp.pop %v819
    %v821 = vmul.f32 1.0, %v820
    %v822 = vmul.f32 %v821, 2.0
    %v823 = vsub.f32 %v822, 1.0
    %v824 = vmul.f32 %v821, %v655
    %826 = vrot.lane.b32.xlu0 %v823, 64
    %v827 = vpop.permute.xlu0 %826
    %v829 = vmul.f32 %v821, %v827
    %831 = vrot.lane.b32.xlu0 %v829, 32
    %v832 = vpop.permute.xlu0 %831
    %v834 = vadd.f32 %v824, %v832
    %v835 = vtanh.pop %v834
    %837 = vrot.lane.b32.xlu0 %v835, 64
    %v838 = vpop.permute.xlu0 %837
    %v840 = vmul.f32 %v821, %v838
    %v841 = vld [vmem:[#allocation2 + $0x3] sm:$0x1]
    %v842 = vld [vmem:[#allocation2 + $0xb] sm:$0x1]
    %v845 = vrot.slane %v842, 7
    %v846 = vsel %vm52, %v845, %v841
    %v847 = vsel %vm54, %v846, 0
    %849 = vmatprep.subr.mxu0 0.0
    %850 = vmatpush1.msra.mxu0 %v295
    %851 = vmatprep.subr.mxu0 0.0
    %852 = vmatpush1.msra.mxu0 %v296
    %853 = vmatprep.subr.mxu0 0.0
    %854 = vmatpush1.msra.mxu0 0.0
    %855 = vmatprep.subr.mxu0 0.0
    %856 = vmatpush1.msra.mxu0 0.0
    %857 = vmatprep.subr.mxu0 0.0
    %858 = vmatpush1.msra.mxu0 0.0
    %859 = vmatprep.subr.mxu0 0.0
    %860 = vmatpush1.msra.mxu0 0.0
    %861 = vmatprep.subr.mxu0 0.0
    %862 = vmatpush1.msra.mxu0 0.0
    %863 = vmatprep.subr.mxu0 0.0
    %864 = vmatpush1.msra.mxu0 0.0
    %865 = vmatprep.subr.mxu0 0.0
    %866 = vmatpush1.msra.mxu0 0.0
    %867 = vmatprep.subr.mxu0 0.0
    %868 = vmatpush1.msra.mxu0 0.0
    %869 = vmatprep.subr.mxu0 0.0
    %870 = vmatpush1.msra.mxu0 0.0
    %871 = vmatprep.subr.mxu0 0.0
    %872 = vmatpush1.msra.mxu0 0.0
    %873 = vmatprep.subr.mxu0 0.0
    %874 = vmatpush1.msra.mxu0 0.0
    %875 = vmatprep.subr.mxu0 0.0
    %876 = vmatpush1.msra.mxu0 0.0
    %877 = vmatprep.subr.mxu0 0.0
    %878 = vmatpush1.msra.mxu0 0.0
    %879 = vmatprep.subr.mxu0 0.0
    %880 = vmatpush1.msra.mxu0 0.0
    %881 = vmatprep.subr.mxu0 0.0
    %882 = vmatpush1.msra.mxu0 0.0
    %883 = vmatprep.subr.mxu0 0.0
    %884 = vmatpush1.msra.mxu0 0.0
    %885 = vmatprep.subr.mxu0 0.0
    %886 = vmatpush1.msra.mxu0 0.0
    %887 = vmatprep.subr.mxu0 0.0
    %888 = vmatpush1.msra.mxu0 0.0
    %889 = vmatprep.subr.mxu0 0.0
    %890 = vmatpush1.msra.mxu0 0.0
    %891 = vmatprep.subr.mxu0 0.0
    %892 = vmatpush1.msra.mxu0 0.0
    %893 = vmatprep.subr.mxu0 0.0
    %894 = vmatpush1.msra.mxu0 0.0
    %895 = vmatprep.subr.mxu0 0.0
    %896 = vmatpush1.msra.mxu0 0.0
    %897 = vmatprep.subr.mxu0 0.0
    %898 = vmatpush1.msra.mxu0 0.0
    %899 = vmatprep.subr.mxu0 0.0
    %900 = vmatpush1.msra.mxu0 0.0
    %901 = vmatprep.subr.mxu0 0.0
    %902 = vmatpush1.msra.mxu0 0.0
    %903 = vmatprep.subr.mxu0 0.0
    %904 = vmatpush1.msra.mxu0 0.0
    %905 = vmatprep.subr.mxu0 0.0
    %906 = vmatpush1.msra.mxu0 0.0
    %907 = vmatprep.subr.mxu0 0.0
    %908 = vmatpush1.msra.mxu0 0.0
    %909 = vmatprep.subr.mxu0 0.0
    %910 = vmatpush1.msra.mxu0 0.0
    %911 = vmatprep.subr.mxu0 0.0
    %912 = vmatpush1.msra.mxu0 0.0
    %913 = vmatprep.mubr.f32.mxu0 0.0
    %914 = vmatmul.mubr.f32.gmra.mrb[0].mxu0 %v847
    %v915 = vpop.f32.mrb[0].mxu0
    %v916 = vadd.f32 %v307, %v915
    %v917 = vpop.f32.mrb[0].mxu0
    %918 = vdwg.mxu0
    %920 = vrot.lane.b32.xlu0 %v840, 32
    %v921 = vpop.permute.xlu0 %920
    %v922 = vsel %vm137, %v921, 0
    %924 = vmatprep.subr.mxu0 0.0
    %925 = vmatpush1.msra.mxu0 %v297
    %926 = vmatprep.subr.mxu0 0.0
    %927 = vmatpush1.msra.mxu0 %v298
    %928 = vmatprep.subr.mxu0 0.0
    %929 = vmatpush1.msra.mxu0 %v299
    %930 = vmatprep.subr.mxu0 0.0
    %931 = vmatpush1.msra.mxu0 %v300
    %932 = vmatprep.subr.mxu0 0.0
    %933 = vmatpush1.msra.mxu0 0.0
    %934 = vmatprep.subr.mxu0 0.0
    %935 = vmatpush1.msra.mxu0 0.0
    %936 = vmatprep.subr.mxu0 0.0
    %937 = vmatpush1.msra.mxu0 0.0
    %938 = vmatprep.subr.mxu0 0.0
    %939 = vmatpush1.msra.mxu0 0.0
    %940 = vmatprep.subr.mxu0 0.0
    %941 = vmatpush1.msra.mxu0 0.0
    %942 = vmatprep.subr.mxu0 0.0
    %943 = vmatpush1.msra.mxu0 0.0
    %944 = vmatprep.subr.mxu0 0.0
    %945 = vmatpush1.msra.mxu0 0.0
    %946 = vmatprep.subr.mxu0 0.0
    %947 = vmatpush1.msra.mxu0 0.0
    %948 = vmatprep.subr.mxu0 0.0
    %949 = vmatpush1.msra.mxu0 0.0
    %950 = vmatprep.subr.mxu0 0.0
    %951 = vmatpush1.msra.mxu0 0.0
    %952 = vmatprep.subr.mxu0 0.0
    %953 = vmatpush1.msra.mxu0 0.0
    %954 = vmatprep.subr.mxu0 0.0
    %955 = vmatpush1.msra.mxu0 0.0
    %956 = vmatprep.subr.mxu0 0.0
    %957 = vmatpush1.msra.mxu0 0.0
    %958 = vmatprep.subr.mxu0 0.0
    %959 = vmatpush1.msra.mxu0 0.0
    %960 = vmatprep.subr.mxu0 0.0
    %961 = vmatpush1.msra.mxu0 0.0
    %962 = vmatprep.subr.mxu0 0.0
    %963 = vmatpush1.msra.mxu0 0.0
    %964 = vmatprep.subr.mxu0 0.0
    %965 = vmatpush1.msra.mxu0 0.0
    %966 = vmatprep.subr.mxu0 0.0
    %967 = vmatpush1.msra.mxu0 0.0
    %968 = vmatprep.subr.mxu0 0.0
    %969 = vmatpush1.msra.mxu0 0.0
    %970 = vmatprep.subr.mxu0 0.0
    %971 = vmatpush1.msra.mxu0 0.0
    %972 = vmatprep.subr.mxu0 0.0
    %973 = vmatpush1.msra.mxu0 0.0
    %974 = vmatprep.subr.mxu0 0.0
    %975 = vmatpush1.msra.mxu0 0.0
    %976 = vmatprep.subr.mxu0 0.0
    %977 = vmatpush1.msra.mxu0 0.0
    %978 = vmatprep.subr.mxu0 0.0
    %979 = vmatpush1.msra.mxu0 0.0
    %980 = vmatprep.subr.mxu0 0.0
    %981 = vmatpush1.msra.mxu0 0.0
    %982 = vmatprep.subr.mxu0 0.0
    %983 = vmatpush1.msra.mxu0 0.0
    %984 = vmatprep.subr.mxu0 0.0
    %985 = vmatpush1.msra.mxu0 0.0
    %986 = vmatprep.subr.mxu0 0.0
    %987 = vmatpush1.msra.mxu0 0.0
    %988 = vmatprep.mubr.f32.mxu0 0.0
    %989 = vmatmul.mubr.f32.gmra.mrb[0].mxu0 %v922
    %v990 = vpop.f32.mrb[0].mxu0
    %v991 = vadd.f32 0.0, %v990
    %v992 = vpop.f32.mrb[0].mxu0
    %993 = vdwg.mxu0
    %v994 = vadd.f32 %v916, %v991
    %v995 = vxor.u32 %v994, 2147483648
    %v996 = vmul.f32 %v995, 1.442695
    %v997 = vpow.pop %v996
    %v998 = vadd.f32 %v997, 1.0
    %v999 = vrcp.pop %v998
    %v1000 = vmul.f32 1.0, %v999
    %v1001 = vmul.f32 %v1000, 2.0
    %v1002 = vsub.f32 %v1001, 1.0
    %v1003 = vmul.f32 %v1000, %v834
    %1005 = vrot.lane.b32.xlu0 %v1002, 64
    %v1006 = vpop.permute.xlu0 %1005
    %v1008 = vmul.f32 %v1000, %v1006
    %1010 = vrot.lane.b32.xlu0 %v1008, 32
    %v1011 = vpop.permute.xlu0 %1010
    %v1013 = vadd.f32 %v1003, %v1011
    %v1014 = vtanh.pop %v1013
    %1016 = vrot.lane.b32.xlu0 %v1014, 64
    %v1017 = vpop.permute.xlu0 %1016
    %v1019 = vmul.f32 %v1000, %v1017
    %v1020 = vld [vmem:[#allocation2 + $0x4] sm:$0x1]
    %v1021 = vld [vmem:[#allocation2 + $0xc] sm:$0x1]
    %v1024 = vrot.slane %v1021, 7
    %v1025 = vsel %vm52, %v1024, %v1020
    %v1026 = vsel %vm54, %v1025, 0
    %1028 = vmatprep.subr.mxu0 0.0
    %1029 = vmatpush1.msra.mxu0 %v295
    %1030 = vmatprep.subr.mxu0 0.0
    %1031 = vmatpush1.msra.mxu0 %v296
    %1032 = vmatprep.subr.mxu0 0.0
    %1033 = vmatpush1.msra.mxu0 0.0
    %1034 = vmatprep.subr.mxu0 0.0
    %1035 = vmatpush1.msra.mxu0 0.0
    %1036 = vmatprep.subr.mxu0 0.0
    %1037 = vmatpush1.msra.mxu0 0.0
    %1038 = vmatprep.subr.mxu0 0.0
    %1039 = vmatpush1.msra.mxu0 0.0
    %1040 = vmatprep.subr.mxu0 0.0
    %1041 = vmatpush1.msra.mxu0 0.0
    %1042 = vmatprep.subr.mxu0 0.0
    %1043 = vmatpush1.msra.mxu0 0.0
    %1044 = vmatprep.subr.mxu0 0.0
    %1045 = vmatpush1.msra.mxu0 0.0
    %1046 = vmatprep.subr.mxu0 0.0
    %1047 = vmatpush1.msra.mxu0 0.0
    %1048 = vmatprep.subr.mxu0 0.0
    %1049 = vmatpush1.msra.mxu0 0.0
    %1050 = vmatprep.subr.mxu0 0.0
    %1051 = vmatpush1.msra.mxu0 0.0
    %1052 = vmatprep.subr.mxu0 0.0
    %1053 = vmatpush1.msra.mxu0 0.0
    %1054 = vmatprep.subr.mxu0 0.0
    %1055 = vmatpush1.msra.mxu0 0.0
    %1056 = vmatprep.subr.mxu0 0.0
    %1057 = vmatpush1.msra.mxu0 0.0
    %1058 = vmatprep.subr.mxu0 0.0
    %1059 = vmatpush1.msra.mxu0 0.0
    %1060 = vmatprep.subr.mxu0 0.0
    %1061 = vmatpush1.msra.mxu0 0.0
    %1062 = vmatprep.subr.mxu0 0.0
    %1063 = vmatpush1.msra.mxu0 0.0
    %1064 = vmatprep.subr.mxu0 0.0
    %1065 = vmatpush1.msra.mxu0 0.0
    %1066 = vmatprep.subr.mxu0 0.0
    %1067 = vmatpush1.msra.mxu0 0.0
    %1068 = vmatprep.subr.mxu0 0.0
    %1069 = vmatpush1.msra.mxu0 0.0
    %1070 = vmatprep.subr.mxu0 0.0
    %1071 = vmatpush1.msra.mxu0 0.0
    %1072 = vmatprep.subr.mxu0 0.0
    %1073 = vmatpush1.msra.mxu0 0.0
    %1074 = vmatprep.subr.mxu0 0.0
    %1075 = vmatpush1.msra.mxu0 0.0
    %1076 = vmatprep.subr.mxu0 0.0
    %1077 = vmatpush1.msra.mxu0 0.0
    %1078 = vmatprep.subr.mxu0 0.0
    %1079 = vmatpush1.msra.mxu0 0.0
    %1080 = vmatprep.subr.mxu0 0.0
    %1081 = vmatpush1.msra.mxu0 0.0
    %1082 = vmatprep.subr.mxu0 0.0
    %1083 = vmatpush1.msra.mxu0 0.0
    %1084 = vmatprep.subr.mxu0 0.0
    %1085 = vmatpush1.msra.mxu0 0.0
    %1086 = vmatprep.subr.mxu0 0.0
    %1087 = vmatpush1.msra.mxu0 0.0
    %1088 = vmatprep.subr.mxu0 0.0
    %1089 = vmatpush1.msra.mxu0 0.0
    %1090 = vmatprep.subr.mxu0 0.0
    %1091 = vmatpush1.msra.mxu0 0.0
    %1092 = vmatprep.mubr.f32.mxu0 0.0
    %1093 = vmatmul.mubr.f32.gmra.mrb[0].mxu0 %v1026
    %v1094 = vpop.f32.mrb[0].mxu0
    %v1095 = vadd.f32 %v307, %v1094
    %v1096 = vpop.f32.mrb[0].mxu0
    %1097 = vdwg.mxu0
    %1099 = vrot.lane.b32.xlu0 %v1019, 32
    %v1100 = vpop.permute.xlu0 %1099
    %v1101 = vsel %vm137, %v1100, 0
    %1103 = vmatprep.subr.mxu0 0.0
    %1104 = vmatpush1.msra.mxu0 %v297
    %1105 = vmatprep.subr.mxu0 0.0
    %1106 = vmatpush1.msra.mxu0 %v298
    %1107 = vmatprep.subr.mxu0 0.0
    %1108 = vmatpush1.msra.mxu0 %v299
    %1109 = vmatprep.subr.mxu0 0.0
    %1110 = vmatpush1.msra.mxu0 %v300
    %1111 = vmatprep.subr.mxu0 0.0
    %1112 = vmatpush1.msra.mxu0 0.0
    %1113 = vmatprep.subr.mxu0 0.0
    %1114 = vmatpush1.msra.mxu0 0.0
    %1115 = vmatprep.subr.mxu0 0.0
    %1116 = vmatpush1.msra.mxu0 0.0
    %1117 = vmatprep.subr.mxu0 0.0
    %1118 = vmatpush1.msra.mxu0 0.0
    %1119 = vmatprep.subr.mxu0 0.0
    %1120 = vmatpush1.msra.mxu0 0.0
    %1121 = vmatprep.subr.mxu0 0.0
    %1122 = vmatpush1.msra.mxu0 0.0
    %1123 = vmatprep.subr.mxu0 0.0
    %1124 = vmatpush1.msra.mxu0 0.0
    %1125 = vmatprep.subr.mxu0 0.0
    %1126 = vmatpush1.msra.mxu0 0.0
    %1127 = vmatprep.subr.mxu0 0.0
    %1128 = vmatpush1.msra.mxu0 0.0
    %1129 = vmatprep.subr.mxu0 0.0
    %1130 = vmatpush1.msra.mxu0 0.0
    %1131 = vmatprep.subr.mxu0 0.0
    %1132 = vmatpush1.msra.mxu0 0.0
    %1133 = vmatprep.subr.mxu0 0.0
    %1134 = vmatpush1.msra.mxu0 0.0
    %1135 = vmatprep.subr.mxu0 0.0
    %1136 = vmatpush1.msra.mxu0 0.0
    %1137 = vmatprep.subr.mxu0 0.0
    %1138 = vmatpush1.msra.mxu0 0.0
    %1139 = vmatprep.subr.mxu0 0.0
    %1140 = vmatpush1.msra.mxu0 0.0
    %1141 = vmatprep.subr.mxu0 0.0
    %1142 = vmatpush1.msra.mxu0 0.0
    %1143 = vmatprep.subr.mxu0 0.0
    %1144 = vmatpush1.msra.mxu0 0.0
    %1145 = vmatprep.subr.mxu0 0.0
    %1146 = vmatpush1.msra.mxu0 0.0
    %1147 = vmatprep.subr.mxu0 0.0
    %1148 = vmatpush1.msra.mxu0 0.0
    %1149 = vmatprep.subr.mxu0 0.0
    %1150 = vmatpush1.msra.mxu0 0.0
    %1151 = vmatprep.subr.mxu0 0.0
    %1152 = vmatpush1.msra.mxu0 0.0
    %1153 = vmatprep.subr.mxu0 0.0
    %1154 = vmatpush1.msra.mxu0 0.0
    %1155 = vmatprep.subr.mxu0 0.0
    %1156 = vmatpush1.msra.mxu0 0.0
    %1157 = vmatprep.subr.mxu0 0.0
    %1158 = vmatpush1.msra.mxu0 0.0
    %1159 = vmatprep.subr.mxu0 0.0
    %1160 = vmatpush1.msra.mxu0 0.0
    %1161 = vmatprep.subr.mxu0 0.0
    %1162 = vmatpush1.msra.mxu0 0.0
    %1163 = vmatprep.subr.mxu0 0.0
    %1164 = vmatpush1.msra.mxu0 0.0
    %1165 = vmatprep.subr.mxu0 0.0
    %1166 = vmatpush1.msra.mxu0 0.0
    %1167 = vmatprep.mubr.f32.mxu0 0.0
    %1168 = vmatmul.mubr.f32.gmra.mrb[0].mxu0 %v1101
    %v1169 = vpop.f32.mrb[0].mxu0
    %v1170 = vadd.f32 0.0, %v1169
    %v1171 = vpop.f32.mrb[0].mxu0
    %1172 = vdwg.mxu0
    %v1173 = vadd.f32 %v1095, %v1170
    %v1174 = vxor.u32 %v1173, 2147483648
    %v1175 = vmul.f32 %v1174, 1.442695
    %v1176 = vpow.pop %v1175
    %v1177 = vadd.f32 %v1176, 1.0
    %v1178 = vrcp.pop %v1177
    %v1179 = vmul.f32 1.0, %v1178
    %v1180 = vmul.f32 %v1179, 2.0
    %v1181 = vsub.f32 %v1180, 1.0
    %v1182 = vmul.f32 %v1179, %v1013
    %1184 = vrot.lane.b32.xlu0 %v1181, 64
    %v1185 = vpop.permute.xlu0 %1184
    %v1187 = vmul.f32 %v1179, %v1185
    %1189 = vrot.lane.b32.xlu0 %v1187, 32
    %v1190 = vpop.permute.xlu0 %1189
    %v1192 = vadd.f32 %v1182, %v1190
    %v1193 = vtanh.pop %v1192
    %1195 = vrot.lane.b32.xlu0 %v1193, 64
    %v1196 = vpop.permute.xlu0 %1195
    %v1198 = vmul.f32 %v1179, %v1196
    %v1199 = vld [vmem:[#allocation2 + $0x5] sm:$0x1]
    %v1200 = vld [vmem:[#allocation2 + $0xd] sm:$0x1]
    %v1203 = vrot.slane %v1200, 7
    %v1204 = vsel %vm52, %v1203, %v1199
    %v1205 = vsel %vm54, %v1204, 0
    %1207 = vmatprep.subr.mxu0 0.0
    %1208 = vmatpush1.msra.mxu0 %v295
    %1209 = vmatprep.subr.mxu0 0.0
    %1210 = vmatpush1.msra.mxu0 %v296
    %1211 = vmatprep.subr.mxu0 0.0
    %1212 = vmatpush1.msra.mxu0 0.0
    %1213 = vmatprep.subr.mxu0 0.0
    %1214 = vmatpush1.msra.mxu0 0.0
    %1215 = vmatprep.subr.mxu0 0.0
    %1216 = vmatpush1.msra.mxu0 0.0
    %1217 = vmatprep.subr.mxu0 0.0
    %1218 = vmatpush1.msra.mxu0 0.0
    %1219 = vmatprep.subr.mxu0 0.0
    %1220 = vmatpush1.msra.mxu0 0.0
    %1221 = vmatprep.subr.mxu0 0.0
    %1222 = vmatpush1.msra.mxu0 0.0
    %1223 = vmatprep.subr.mxu0 0.0
    %1224 = vmatpush1.msra.mxu0 0.0
    %1225 = vmatprep.subr.mxu0 0.0
    %1226 = vmatpush1.msra.mxu0 0.0
    %1227 = vmatprep.subr.mxu0 0.0
    %1228 = vmatpush1.msra.mxu0 0.0
    %1229 = vmatprep.subr.mxu0 0.0
    %1230 = vmatpush1.msra.mxu0 0.0
    %1231 = vmatprep.subr.mxu0 0.0
    %1232 = vmatpush1.msra.mxu0 0.0
    %1233 = vmatprep.subr.mxu0 0.0
    %1234 = vmatpush1.msra.mxu0 0.0
    %1235 = vmatprep.subr.mxu0 0.0
    %1236 = vmatpush1.msra.mxu0 0.0
    %1237 = vmatprep.subr.mxu0 0.0
    %1238 = vmatpush1.msra.mxu0 0.0
    %1239 = vmatprep.subr.mxu0 0.0
    %1240 = vmatpush1.msra.mxu0 0.0
    %1241 = vmatprep.subr.mxu0 0.0
    %1242 = vmatpush1.msra.mxu0 0.0
    %1243 = vmatprep.subr.mxu0 0.0
    %1244 = vmatpush1.msra.mxu0 0.0
    %1245 = vmatprep.subr.mxu0 0.0
    %1246 = vmatpush1.msra.mxu0 0.0
    %1247 = vmatprep.subr.mxu0 0.0
    %1248 = vmatpush1.msra.mxu0 0.0
    %1249 = vmatprep.subr.mxu0 0.0
    %1250 = vmatpush1.msra.mxu0 0.0
    %1251 = vmatprep.subr.mxu0 0.0
    %1252 = vmatpush1.msra.mxu0 0.0
    %1253 = vmatprep.subr.mxu0 0.0
    %1254 = vmatpush1.msra.mxu0 0.0
    %1255 = vmatprep.subr.mxu0 0.0
    %1256 = vmatpush1.msra.mxu0 0.0
    %1257 = vmatprep.subr.mxu0 0.0
    %1258 = vmatpush1.msra.mxu0 0.0
    %1259 = vmatprep.subr.mxu0 0.0
    %1260 = vmatpush1.msra.mxu0 0.0
    %1261 = vmatprep.subr.mxu0 0.0
    %1262 = vmatpush1.msra.mxu0 0.0
    %1263 = vmatprep.subr.mxu0 0.0
    %1264 = vmatpush1.msra.mxu0 0.0
    %1265 = vmatprep.subr.mxu0 0.0
    %1266 = vmatpush1.msra.mxu0 0.0
    %1267 = vmatprep.subr.mxu0 0.0
    %1268 = vmatpush1.msra.mxu0 0.0
    %1269 = vmatprep.subr.mxu0 0.0
    %1270 = vmatpush1.msra.mxu0 0.0
    %1271 = vmatprep.mubr.f32.mxu0 0.0
    %1272 = vmatmul.mubr.f32.gmra.mrb[0].mxu0 %v1205
    %v1273 = vpop.f32.mrb[0].mxu0
    %v1274 = vadd.f32 %v307, %v1273
    %v1275 = vpop.f32.mrb[0].mxu0
    %1276 = vdwg.mxu0
    %1278 = vrot.lane.b32.xlu0 %v1198, 32
    %v1279 = vpop.permute.xlu0 %1278
    %v1280 = vsel %vm137, %v1279, 0
    %1282 = vmatprep.subr.mxu0 0.0
    %1283 = vmatpush1.msra.mxu0 %v297
    %1284 = vmatprep.subr.mxu0 0.0
    %1285 = vmatpush1.msra.mxu0 %v298
    %1286 = vmatprep.subr.mxu0 0.0
    %1287 = vmatpush1.msra.mxu0 %v299
    %1288 = vmatprep.subr.mxu0 0.0
    %1289 = vmatpush1.msra.mxu0 %v300
    %1290 = vmatprep.subr.mxu0 0.0
    %1291 = vmatpush1.msra.mxu0 0.0
    %1292 = vmatprep.subr.mxu0 0.0
    %1293 = vmatpush1.msra.mxu0 0.0
    %1294 = vmatprep.subr.mxu0 0.0
    %1295 = vmatpush1.msra.mxu0 0.0
    %1296 = vmatprep.subr.mxu0 0.0
    %1297 = vmatpush1.msra.mxu0 0.0
    %1298 = vmatprep.subr.mxu0 0.0
    %1299 = vmatpush1.msra.mxu0 0.0
    %1300 = vmatprep.subr.mxu0 0.0
    %1301 = vmatpush1.msra.mxu0 0.0
    %1302 = vmatprep.subr.mxu0 0.0
    %1303 = vmatpush1.msra.mxu0 0.0
    %1304 = vmatprep.subr.mxu0 0.0
    %1305 = vmatpush1.msra.mxu0 0.0
    %1306 = vmatprep.subr.mxu0 0.0
    %1307 = vmatpush1.msra.mxu0 0.0
    %1308 = vmatprep.subr.mxu0 0.0
    %1309 = vmatpush1.msra.mxu0 0.0
    %1310 = vmatprep.subr.mxu0 0.0
    %1311 = vmatpush1.msra.mxu0 0.0
    %1312 = vmatprep.subr.mxu0 0.0
    %1313 = vmatpush1.msra.mxu0 0.0
    %1314 = vmatprep.subr.mxu0 0.0
    %1315 = vmatpush1.msra.mxu0 0.0
    %1316 = vmatprep.subr.mxu0 0.0
    %1317 = vmatpush1.msra.mxu0 0.0
    %1318 = vmatprep.subr.mxu0 0.0
    %1319 = vmatpush1.msra.mxu0 0.0
    %1320 = vmatprep.subr.mxu0 0.0
    %1321 = vmatpush1.msra.mxu0 0.0
    %1322 = vmatprep.subr.mxu0 0.0
    %1323 = vmatpush1.msra.mxu0 0.0
    %1324 = vmatprep.subr.mxu0 0.0
    %1325 = vmatpush1.msra.mxu0 0.0
    %1326 = vmatprep.subr.mxu0 0.0
    %1327 = vmatpush1.msra.mxu0 0.0
    %1328 = vmatprep.subr.mxu0 0.0
    %1329 = vmatpush1.msra.mxu0 0.0
    %1330 = vmatprep.subr.mxu0 0.0
    %1331 = vmatpush1.msra.mxu0 0.0
    %1332 = vmatprep.subr.mxu0 0.0
    %1333 = vmatpush1.msra.mxu0 0.0
    %1334 = vmatprep.subr.mxu0 0.0
    %1335 = vmatpush1.msra.mxu0 0.0
    %1336 = vmatprep.subr.mxu0 0.0
    %1337 = vmatpush1.msra.mxu0 0.0
    %1338 = vmatprep.subr.mxu0 0.0
    %1339 = vmatpush1.msra.mxu0 0.0
    %1340 = vmatprep.subr.mxu0 0.0
    %1341 = vmatpush1.msra.mxu0 0.0
    %1342 = vmatprep.subr.mxu0 0.0
    %1343 = vmatpush1.msra.mxu0 0.0
    %1344 = vmatprep.subr.mxu0 0.0
    %1345 = vmatpush1.msra.mxu0 0.0
    %1346 = vmatprep.mubr.f32.mxu0 0.0
    %1347 = vmatmul.mubr.f32.gmra.mrb[0].mxu0 %v1280
    %v1348 = vpop.f32.mrb[0].mxu0
    %v1349 = vadd.f32 0.0, %v1348
    %v1350 = vpop.f32.mrb[0].mxu0
    %1351 = vdwg.mxu0
    %v1352 = vadd.f32 %v1274, %v1349
    %v1353 = vxor.u32 %v1352, 2147483648
    %v1354 = vmul.f32 %v1353, 1.442695
    %v1355 = vpow.pop %v1354
    %v1356 = vadd.f32 %v1355, 1.0
    %v1357 = vrcp.pop %v1356
    %v1358 = vmul.f32 1.0, %v1357
    %v1359 = vmul.f32 %v1358, 2.0
    %v1360 = vsub.f32 %v1359, 1.0
    %v1361 = vmul.f32 %v1358, %v1192
    %1363 = vrot.lane.b32.xlu0 %v1360, 64
    %v1364 = vpop.permute.xlu0 %1363
    %v1366 = vmul.f32 %v1358, %v1364
    %1368 = vrot.lane.b32.xlu0 %v1366, 32
    %v1369 = vpop.permute.xlu0 %1368
    %v1371 = vadd.f32 %v1361, %v1369
    %v1372 = vtanh.pop %v1371
    %1374 = vrot.lane.b32.xlu0 %v1372, 64
    %v1375 = vpop.permute.xlu0 %1374
    %v1377 = vmul.f32 %v1358, %v1375
    %v1378 = vld [vmem:[#allocation2 + $0x6] sm:$0x1]
    %v1379 = vld [vmem:[#allocation2 + $0xe] sm:$0x1]
    %v1382 = vrot.slane %v1379, 7
    %v1383 = vsel %vm52, %v1382, %v1378
    %v1384 = vsel %vm54, %v1383, 0
    %1386 = vmatprep.subr.mxu0 0.0
    %1387 = vmatpush1.msra.mxu0 %v295
    %1388 = vmatprep.subr.mxu0 0.0
    %1389 = vmatpush1.msra.mxu0 %v296
    %1390 = vmatprep.subr.mxu0 0.0
    %1391 = vmatpush1.msra.mxu0 0.0
    %1392 = vmatprep.subr.mxu0 0.0
    %1393 = vmatpush1.msra.mxu0 0.0
    %1394 = vmatprep.subr.mxu0 0.0
    %1395 = vmatpush1.msra.mxu0 0.0
    %1396 = vmatprep.subr.mxu0 0.0
    %1397 = vmatpush1.msra.mxu0 0.0
    %1398 = vmatprep.subr.mxu0 0.0
    %1399 = vmatpush1.msra.mxu0 0.0
    %1400 = vmatprep.subr.mxu0 0.0
    %1401 = vmatpush1.msra.mxu0 0.0
    %1402 = vmatprep.subr.mxu0 0.0
    %1403 = vmatpush1.msra.mxu0 0.0
    %1404 = vmatprep.subr.mxu0 0.0
    %1405 = vmatpush1.msra.mxu0 0.0
    %1406 = vmatprep.subr.mxu0 0.0
    %1407 = vmatpush1.msra.mxu0 0.0
    %1408 = vmatprep.subr.mxu0 0.0
    %1409 = vmatpush1.msra.mxu0 0.0
    %1410 = vmatprep.subr.mxu0 0.0
    %1411 = vmatpush1.msra.mxu0 0.0
    %1412 = vmatprep.subr.mxu0 0.0
    %1413 = vmatpush1.msra.mxu0 0.0
    %1414 = vmatprep.subr.mxu0 0.0
    %1415 = vmatpush1.msra.mxu0 0.0
    %1416 = vmatprep.subr.mxu0 0.0
    %1417 = vmatpush1.msra.mxu0 0.0
    %1418 = vmatprep.subr.mxu0 0.0
    %1419 = vmatpush1.msra.mxu0 0.0
    %1420 = vmatprep.subr.mxu0 0.0
    %1421 = vmatpush1.msra.mxu0 0.0
    %1422 = vmatprep.subr.mxu0 0.0
    %1423 = vmatpush1.msra.mxu0 0.0
    %1424 = vmatprep.subr.mxu0 0.0
    %1425 = vmatpush1.msra.mxu0 0.0
    %1426 = vmatprep.subr.mxu0 0.0
    %1427 = vmatpush1.msra.mxu0 0.0
    %1428 = vmatprep.subr.mxu0 0.0
    %1429 = vmatpush1.msra.mxu0 0.0
    %1430 = vmatprep.subr.mxu0 0.0
    %1431 = vmatpush1.msra.mxu0 0.0
    %1432 = vmatprep.subr.mxu0 0.0
    %1433 = vmatpush1.msra.mxu0 0.0
    %1434 = vmatprep.subr.mxu0 0.0
    %1435 = vmatpush1.msra.mxu0 0.0
    %1436 = vmatprep.subr.mxu0 0.0
    %1437 = vmatpush1.msra.mxu0 0.0
    %1438 = vmatprep.subr.mxu0 0.0
    %1439 = vmatpush1.msra.mxu0 0.0
    %1440 = vmatprep.subr.mxu0 0.0
    %1441 = vmatpush1.msra.mxu0 0.0
    %1442 = vmatprep.subr.mxu0 0.0
    %1443 = vmatpush1.msra.mxu0 0.0
    %1444 = vmatprep.subr.mxu0 0.0
    %1445 = vmatpush1.msra.mxu0 0.0
    %1446 = vmatprep.subr.mxu0 0.0
    %1447 = vmatpush1.msra.mxu0 0.0
    %1448 = vmatprep.subr.mxu0 0.0
    %1449 = vmatpush1.msra.mxu0 0.0
    %1450 = vmatprep.mubr.f32.mxu0 0.0
    %1451 = vmatmul.mubr.f32.gmra.mrb[0].mxu0 %v1384
    %v1452 = vpop.f32.mrb[0].mxu0
    %v1453 = vadd.f32 %v307, %v1452
    %v1454 = vpop.f32.mrb[0].mxu0
    %1455 = vdwg.mxu0
    %1457 = vrot.lane.b32.xlu0 %v1377, 32
    %v1458 = vpop.permute.xlu0 %1457
    %v1459 = vsel %vm137, %v1458, 0
    %1461 = vmatprep.subr.mxu0 0.0
    %1462 = vmatpush1.msra.mxu0 %v297
    %1463 = vmatprep.subr.mxu0 0.0
    %1464 = vmatpush1.msra.mxu0 %v298
    %1465 = vmatprep.subr.mxu0 0.0
    %1466 = vmatpush1.msra.mxu0 %v299
    %1467 = vmatprep.subr.mxu0 0.0
    %1468 = vmatpush1.msra.mxu0 %v300
    %1469 = vmatprep.subr.mxu0 0.0
    %1470 = vmatpush1.msra.mxu0 0.0
    %1471 = vmatprep.subr.mxu0 0.0
    %1472 = vmatpush1.msra.mxu0 0.0
    %1473 = vmatprep.subr.mxu0 0.0
    %1474 = vmatpush1.msra.mxu0 0.0
    %1475 = vmatprep.subr.mxu0 0.0
    %1476 = vmatpush1.msra.mxu0 0.0
    %1477 = vmatprep.subr.mxu0 0.0
    %1478 = vmatpush1.msra.mxu0 0.0
    %1479 = vmatprep.subr.mxu0 0.0
    %1480 = vmatpush1.msra.mxu0 0.0
    %1481 = vmatprep.subr.mxu0 0.0
    %1482 = vmatpush1.msra.mxu0 0.0
    %1483 = vmatprep.subr.mxu0 0.0
    %1484 = vmatpush1.msra.mxu0 0.0
    %1485 = vmatprep.subr.mxu0 0.0
    %1486 = vmatpush1.msra.mxu0 0.0
    %1487 = vmatprep.subr.mxu0 0.0
    %1488 = vmatpush1.msra.mxu0 0.0
    %1489 = vmatprep.subr.mxu0 0.0
    %1490 = vmatpush1.msra.mxu0 0.0
    %1491 = vmatprep.subr.mxu0 0.0
    %1492 = vmatpush1.msra.mxu0 0.0
    %1493 = vmatprep.subr.mxu0 0.0
    %1494 = vmatpush1.msra.mxu0 0.0
    %1495 = vmatprep.subr.mxu0 0.0
    %1496 = vmatpush1.msra.mxu0 0.0
    %1497 = vmatprep.subr.mxu0 0.0
    %1498 = vmatpush1.msra.mxu0 0.0
    %1499 = vmatprep.subr.mxu0 0.0
    %1500 = vmatpush1.msra.mxu0 0.0
    %1501 = vmatprep.subr.mxu0 0.0
    %1502 = vmatpush1.msra.mxu0 0.0
    %1503 = vmatprep.subr.mxu0 0.0
    %1504 = vmatpush1.msra.mxu0 0.0
    %1505 = vmatprep.subr.mxu0 0.0
    %1506 = vmatpush1.msra.mxu0 0.0
    %1507 = vmatprep.subr.mxu0 0.0
    %1508 = vmatpush1.msra.mxu0 0.0
    %1509 = vmatprep.subr.mxu0 0.0
    %1510 = vmatpush1.msra.mxu0 0.0
    %1511 = vmatprep.subr.mxu0 0.0
    %1512 = vmatpush1.msra.mxu0 0.0
    %1513 = vmatprep.subr.mxu0 0.0
    %1514 = vmatpush1.msra.mxu0 0.0
    %1515 = vmatprep.subr.mxu0 0.0
    %1516 = vmatpush1.msra.mxu0 0.0
    %1517 = vmatprep.subr.mxu0 0.0
    %1518 = vmatpush1.msra.mxu0 0.0
    %1519 = vmatprep.subr.mxu0 0.0
    %1520 = vmatpush1.msra.mxu0 0.0
    %1521 = vmatprep.subr.mxu0 0.0
    %1522 = vmatpush1.msra.mxu0 0.0
    %1523 = vmatprep.subr.mxu0 0.0
    %1524 = vmatpush1.msra.mxu0 0.0
    %1525 = vmatprep.mubr.f32.mxu0 0.0
    %1526 = vmatmul.mubr.f32.gmra.mrb[0].mxu0 %v1459
    %v1527 = vpop.f32.mrb[0].mxu0
    %v1528 = vadd.f32 0.0, %v1527
    %v1529 = vpop.f32.mrb[0].mxu0
    %1530 = vdwg.mxu0
    %v1531 = vadd.f32 %v1453, %v1528
    %v1532 = vxor.u32 %v1531, 2147483648
    %v1533 = vmul.f32 %v1532, 1.442695
    %v1534 = vpow.pop %v1533
    %v1535 = vadd.f32 %v1534, 1.0
    %v1536 = vrcp.pop %v1535
    %v1537 = vmul.f32 1.0, %v1536
    %v1538 = vmul.f32 %v1537, 2.0
    %v1539 = vsub.f32 %v1538, 1.0
    %v1540 = vmul.f32 %v1537, %v1371
    %1542 = vrot.lane.b32.xlu0 %v1539, 64
    %v1543 = vpop.permute.xlu0 %1542
    %v1545 = vmul.f32 %v1537, %v1543
    %1547 = vrot.lane.b32.xlu0 %v1545, 32
    %v1548 = vpop.permute.xlu0 %1547
    %v1550 = vadd.f32 %v1540, %v1548
    %v1551 = vtanh.pop %v1550
    %1553 = vrot.lane.b32.xlu0 %v1551, 64
    %v1554 = vpop.permute.xlu0 %1553
    %v1556 = vmul.f32 %v1537, %v1554
    %1557 = vmatprep.subr.mxu0 0.0
    %1558 = vmatpush1.msra.mxu0 %v295
    %1559 = vmatprep.subr.mxu0 0.0
    %1560 = vmatpush1.msra.mxu0 %v296
    %1561 = vmatprep.subr.mxu0 0.0
    %1562 = vmatpush1.msra.mxu0 0.0
    %1563 = vmatprep.subr.mxu0 0.0
    %1564 = vmatpush1.msra.mxu0 0.0
    %1565 = vmatprep.subr.mxu0 0.0
    %1566 = vmatpush1.msra.mxu0 0.0
    %1567 = vmatprep.subr.mxu0 0.0
    %1568 = vmatpush1.msra.mxu0 0.0
    %1569 = vmatprep.subr.mxu0 0.0
    %1570 = vmatpush1.msra.mxu0 0.0
    %1571 = vmatprep.subr.mxu0 0.0
    %1572 = vmatpush1.msra.mxu0 0.0
    %1573 = vmatprep.subr.mxu0 0.0
    %1574 = vmatpush1.msra.mxu0 0.0
    %1575 = vmatprep.subr.mxu0 0.0
    %1576 = vmatpush1.msra.mxu0 0.0
    %1577 = vmatprep.subr.mxu0 0.0
    %1578 = vmatpush1.msra.mxu0 0.0
    %1579 = vmatprep.subr.mxu0 0.0
    %1580 = vmatpush1.msra.mxu0 0.0
    %1581 = vmatprep.subr.mxu0 0.0
    %1582 = vmatpush1.msra.mxu0 0.0
    %1583 = vmatprep.subr.mxu0 0.0
    %1584 = vmatpush1.msra.mxu0 0.0
    %1585 = vmatprep.subr.mxu0 0.0
    %1586 = vmatpush1.msra.mxu0 0.0
    %1587 = vmatprep.subr.mxu0 0.0
    %1588 = vmatpush1.msra.mxu0 0.0
    %1589 = vmatprep.subr.mxu0 0.0
    %1590 = vmatpush1.msra.mxu0 0.0
    %1591 = vmatprep.subr.mxu0 0.0
    %1592 = vmatpush1.msra.mxu0 0.0
    %1593 = vmatprep.subr.mxu0 0.0
    %1594 = vmatpush1.msra.mxu0 0.0
    %1595 = vmatprep.subr.mxu0 0.0
    %1596 = vmatpush1.msra.mxu0 0.0
    %1597 = vmatprep.subr.mxu0 0.0
    %1598 = vmatpush1.msra.mxu0 0.0
    %1599 = vmatprep.subr.mxu0 0.0
    %1600 = vmatpush1.msra.mxu0 0.0
    %1601 = vmatprep.subr.mxu0 0.0
    %1602 = vmatpush1.msra.mxu0 0.0
    %1603 = vmatprep.subr.mxu0 0.0
    %1604 = vmatpush1.msra.mxu0 0.0
    %1605 = vmatprep.subr.mxu0 0.0
    %1606 = vmatpush1.msra.mxu0 0.0
    %1607 = vmatprep.subr.mxu0 0.0
    %1608 = vmatpush1.msra.mxu0 0.0
    %1609 = vmatprep.subr.mxu0 0.0
    %1610 = vmatpush1.msra.mxu0 0.0
    %1611 = vmatprep.subr.mxu0 0.0
    %1612 = vmatpush1.msra.mxu0 0.0
    %1613 = vmatprep.subr.mxu0 0.0
    %1614 = vmatpush1.msra.mxu0 0.0
    %1615 = vmatprep.subr.mxu0 0.0
    %1616 = vmatpush1.msra.mxu0 0.0
    %1617 = vmatprep.subr.mxu0 0.0
    %1618 = vmatpush1.msra.mxu0 0.0
    %1619 = vmatprep.subr.mxu0 0.0
    %1620 = vmatpush1.msra.mxu0 0.0
    %1621 = vmatprep.mubr.f32.mxu0 0.0
    %1622 = vmatmul.mubr.f32.gmra.mrb[0].mxu0 %v55
    %v1623 = vpop.f32.mrb[0].mxu0
    %v1624 = vadd.f32 %v307, %v1623
    %v1625 = vpop.f32.mrb[0].mxu0
    %1626 = vdwg.mxu0
    %1628 = vrot.lane.b32.xlu0 %v1556, 32
    %v1629 = vpop.permute.xlu0 %1628
    %v1630 = vsel %vm137, %v1629, 0
    %1632 = vmatprep.subr.mxu0 0.0
    %1633 = vmatpush1.msra.mxu0 %v297
    %1634 = vmatprep.subr.mxu0 0.0
    %1635 = vmatpush1.msra.mxu0 %v298
    %1636 = vmatprep.subr.mxu0 0.0
    %1637 = vmatpush1.msra.mxu0 %v299
    %1638 = vmatprep.subr.mxu0 0.0
    %1639 = vmatpush1.msra.mxu0 %v300
    %1640 = vmatprep.subr.mxu0 0.0
    %1641 = vmatpush1.msra.mxu0 0.0
    %1642 = vmatprep.subr.mxu0 0.0
    %1643 = vmatpush1.msra.mxu0 0.0
    %1644 = vmatprep.subr.mxu0 0.0
    %1645 = vmatpush1.msra.mxu0 0.0
    %1646 = vmatprep.subr.mxu0 0.0
    %1647 = vmatpush1.msra.mxu0 0.0
    %1648 = vmatprep.subr.mxu0 0.0
    %1649 = vmatpush1.msra.mxu0 0.0
    %1650 = vmatprep.subr.mxu0 0.0
    %1651 = vmatpush1.msra.mxu0 0.0
    %1652 = vmatprep.subr.mxu0 0.0
    %1653 = vmatpush1.msra.mxu0 0.0
    %1654 = vmatprep.subr.mxu0 0.0
    %1655 = vmatpush1.msra.mxu0 0.0
    %1656 = vmatprep.subr.mxu0 0.0
    %1657 = vmatpush1.msra.mxu0 0.0
    %1658 = vmatprep.subr.mxu0 0.0
    %1659 = vmatpush1.msra.mxu0 0.0
    %1660 = vmatprep.subr.mxu0 0.0
    %1661 = vmatpush1.msra.mxu0 0.0
    %1662 = vmatprep.subr.mxu0 0.0
    %1663 = vmatpush1.msra.mxu0 0.0
    %1664 = vmatprep.subr.mxu0 0.0
    %1665 = vmatpush1.msra.mxu0 0.0
    %1666 = vmatprep.subr.mxu0 0.0
    %1667 = vmatpush1.msra.mxu0 0.0
    %1668 = vmatprep.subr.mxu0 0.0
    %1669 = vmatpush1.msra.mxu0 0.0
    %1670 = vmatprep.subr.mxu0 0.0
    %1671 = vmatpush1.msra.mxu0 0.0
    %1672 = vmatprep.subr.mxu0 0.0
    %1673 = vmatpush1.msra.mxu0 0.0
    %1674 = vmatprep.subr.mxu0 0.0
    %1675 = vmatpush1.msra.mxu0 0.0
    %1676 = vmatprep.subr.mxu0 0.0
    %1677 = vmatpush1.msra.mxu0 0.0
    %1678 = vmatprep.subr.mxu0 0.0
    %1679 = vmatpush1.msra.mxu0 0.0
    %1680 = vmatprep.subr.mxu0 0.0
    %1681 = vmatpush1.msra.mxu0 0.0
    %1682 = vmatprep.subr.mxu0 0.0
    %1683 = vmatpush1.msra.mxu0 0.0
    %1684 = vmatprep.subr.mxu0 0.0
    %1685 = vmatpush1.msra.mxu0 0.0
    %1686 = vmatprep.subr.mxu0 0.0
    %1687 = vmatpush1.msra.mxu0 0.0
    %1688 = vmatprep.subr.mxu0 0.0
    %1689 = vmatpush1.msra.mxu0 0.0
    %1690 = vmatprep.subr.mxu0 0.0
    %1691 = vmatpush1.msra.mxu0 0.0
    %1692 = vmatprep.subr.mxu0 0.0
    %1693 = vmatpush1.msra.mxu0 0.0
    %1694 = vmatprep.subr.mxu0 0.0
    %1695 = vmatpush1.msra.mxu0 0.0
    %1696 = vmatprep.mubr.f32.mxu0 0.0
    %1697 = vmatmul.mubr.f32.gmra.mrb[0].mxu0 %v1630
    %v1698 = vpop.f32.mrb[0].mxu0
    %v1699 = vadd.f32 0.0, %v1698
    %v1700 = vpop.f32.mrb[0].mxu0
    %1701 = vdwg.mxu0
    %v1702 = vadd.f32 %v1624, %v1699
    %v1703 = vxor.u32 %v1702, 2147483648
    %v1704 = vmul.f32 %v1703, 1.442695
    %v1705 = vpow.pop %v1704
    %v1706 = vadd.f32 %v1705, 1.0
    %v1707 = vrcp.pop %v1706
    %v1708 = vmul.f32 1.0, %v1707
    %v1709 = vmul.f32 %v1708, 2.0
    %v1710 = vsub.f32 %v1709, 1.0
    %v1711 = vmul.f32 %v1708, %v1550
    %1713 = vrot.lane.b32.xlu0 %v1710, 64
    %v1714 = vpop.permute.xlu0 %1713
    %v1716 = vmul.f32 %v1708, %v1714
    %1718 = vrot.lane.b32.xlu0 %v1716, 32
    %v1719 = vpop.permute.xlu0 %1718
    %v1721 = vadd.f32 %v1711, %v1719
    %v1722 = vtanh.pop %v1721
    %1724 = vrot.lane.b32.xlu0 %v1722, 64
    %v1725 = vpop.permute.xlu0 %1724
    %v1727 = vmul.f32 %v1708, %v1725
    %v1728 = vld [vmem:[#allocation5 + $0xe0] sm:$0xff]
    %v1729 = vld [vmem:[#allocation5 + $0xe8] sm:$0xff]
    %v1730 = vld [vmem:[#allocation5 + $0xf0] sm:$0xff]
    %v1731 = vld [vmem:[#allocation5 + $0xf8] sm:$0xff]
    %v1732 = vld [vmem:[#allocation5 + $0x100] sm:$0xff]
    %v1733 = vld [vmem:[#allocation5 + $0x108] sm:$0xff]
    %v1734 = vld [vmem:[#allocation5 + $0x110] sm:$0xff]
    %v1735 = vld [vmem:[#allocation5 + $0x118] sm:$0xff]
    %v1737 = vsel %vm137, %v294, 0
    %1739 = vmatprep.subr.mxu0 0.0
    %1740 = vmatpush1.msra.mxu0 %v1732
    %1741 = vmatprep.subr.mxu0 0.0
    %1742 = vmatpush1.msra.mxu0 %v1733
    %1743 = vmatprep.subr.mxu0 0.0
    %1744 = vmatpush1.msra.mxu0 %v1734
    %1745 = vmatprep.subr.mxu0 0.0
    %1746 = vmatpush1.msra.mxu0 %v1735
    %1747 = vmatprep.subr.mxu0 0.0
    %1748 = vmatpush1.msra.mxu0 0.0
    %1749 = vmatprep.subr.mxu0 0.0
    %1750 = vmatpush1.msra.mxu0 0.0
    %1751 = vmatprep.subr.mxu0 0.0
    %1752 = vmatpush1.msra.mxu0 0.0
    %1753 = vmatprep.subr.mxu0 0.0
    %1754 = vmatpush1.msra.mxu0 0.0
    %1755 = vmatprep.subr.mxu0 0.0
    %1756 = vmatpush1.msra.mxu0 0.0
    %1757 = vmatprep.subr.mxu0 0.0
    %1758 = vmatpush1.msra.mxu0 0.0
    %1759 = vmatprep.subr.mxu0 0.0
    %1760 = vmatpush1.msra.mxu0 0.0
    %1761 = vmatprep.subr.mxu0 0.0
    %1762 = vmatpush1.msra.mxu0 0.0
    %1763 = vmatprep.subr.mxu0 0.0
    %1764 = vmatpush1.msra.mxu0 0.0
    %1765 = vmatprep.subr.mxu0 0.0
    %1766 = vmatpush1.msra.mxu0 0.0
    %1767 = vmatprep.subr.mxu0 0.0
    %1768 = vmatpush1.msra.mxu0 0.0
    %1769 = vmatprep.subr.mxu0 0.0
    %1770 = vmatpush1.msra.mxu0 0.0
    %1771 = vmatprep.subr.mxu0 0.0
    %1772 = vmatpush1.msra.mxu0 0.0
    %1773 = vmatprep.subr.mxu0 0.0
    %1774 = vmatpush1.msra.mxu0 0.0
    %1775 = vmatprep.subr.mxu0 0.0
    %1776 = vmatpush1.msra.mxu0 0.0
    %1777 = vmatprep.subr.mxu0 0.0
    %1778 = vmatpush1.msra.mxu0 0.0
    %1779 = vmatprep.subr.mxu0 0.0
    %1780 = vmatpush1.msra.mxu0 0.0
    %1781 = vmatprep.subr.mxu0 0.0
    %1782 = vmatpush1.msra.mxu0 0.0
    %1783 = vmatprep.subr.mxu0 0.0
    %1784 = vmatpush1.msra.mxu0 0.0
    %1785 = vmatprep.subr.mxu0 0.0
    %1786 = vmatpush1.msra.mxu0 0.0
    %1787 = vmatprep.subr.mxu0 0.0
    %1788 = vmatpush1.msra.mxu0 0.0
    %1789 = vmatprep.subr.mxu0 0.0
    %1790 = vmatpush1.msra.mxu0 0.0
    %1791 = vmatprep.subr.mxu0 0.0
    %1792 = vmatpush1.msra.mxu0 0.0
    %1793 = vmatprep.subr.mxu0 0.0
    %1794 = vmatpush1.msra.mxu0 0.0
    %1795 = vmatprep.subr.mxu0 0.0
    %1796 = vmatpush1.msra.mxu0 0.0
    %1797 = vmatprep.subr.mxu0 0.0
    %1798 = vmatpush1.msra.mxu0 0.0
    %1799 = vmatprep.subr.mxu0 0.0
    %1800 = vmatpush1.msra.mxu0 0.0
    %1801 = vmatprep.subr.mxu0 0.0
    %1802 = vmatpush1.msra.mxu0 0.0
    %1803 = vmatprep.mubr.f32.mxu0 0.0
    %1804 = vmatmul.mubr.f32.gmra.mrb[0].mxu0 %v1737
    %v1805 = vpop.f32.mrb[0].mxu0
    %v1806 = vadd.f32 0.0, %v1805
    %v1807 = vpop.f32.mrb[0].mxu0
    %1808 = vdwg.mxu0
    %1810 = vrot.lane.b32.xlu0 %v1727, 32
    %v1811 = vpop.permute.xlu0 %1810
    %v1812 = vsel %vm137, %v1811, 0
    %1814 = vmatprep.subr.mxu0 0.0
    %1815 = vmatpush1.msra.mxu0 %v1728
    %1816 = vmatprep.subr.mxu0 0.0
    %1817 = vmatpush1.msra.mxu0 %v1729
    %1818 = vmatprep.subr.mxu0 0.0
    %1819 = vmatpush1.msra.mxu0 %v1730
    %1820 = vmatprep.subr.mxu0 0.0
    %1821 = vmatpush1.msra.mxu0 %v1731
    %1822 = vmatprep.subr.mxu0 0.0
    %1823 = vmatpush1.msra.mxu0 0.0
    %1824 = vmatprep.subr.mxu0 0.0
    %1825 = vmatpush1.msra.mxu0 0.0
    %1826 = vmatprep.subr.mxu0 0.0
    %1827 = vmatpush1.msra.mxu0 0.0
    %1828 = vmatprep.subr.mxu0 0.0
    %1829 = vmatpush1.msra.mxu0 0.0
    %1830 = vmatprep.subr.mxu0 0.0
    %1831 = vmatpush1.msra.mxu0 0.0
    %1832 = vmatprep.subr.mxu0 0.0
    %1833 = vmatpush1.msra.mxu0 0.0
    %1834 = vmatprep.subr.mxu0 0.0
    %1835 = vmatpush1.msra.mxu0 0.0
    %1836 = vmatprep.subr.mxu0 0.0
    %1837 = vmatpush1.msra.mxu0 0.0
    %1838 = vmatprep.subr.mxu0 0.0
    %1839 = vmatpush1.msra.mxu0 0.0
    %1840 = vmatprep.subr.mxu0 0.0
    %1841 = vmatpush1.msra.mxu0 0.0
    %1842 = vmatprep.subr.mxu0 0.0
    %1843 = vmatpush1.msra.mxu0 0.0
    %1844 = vmatprep.subr.mxu0 0.0
    %1845 = vmatpush1.msra.mxu0 0.0
    %1846 = vmatprep.subr.mxu0 0.0
    %1847 = vmatpush1.msra.mxu0 0.0
    %1848 = vmatprep.subr.mxu0 0.0
    %1849 = vmatpush1.msra.mxu0 0.0
    %1850 = vmatprep.subr.mxu0 0.0
    %1851 = vmatpush1.msra.mxu0 0.0
    %1852 = vmatprep.subr.mxu0 0.0
    %1853 = vmatpush1.msra.mxu0 0.0
    %1854 = vmatprep.subr.mxu0 0.0
    %1855 = vmatpush1.msra.mxu0 0.0
    %1856 = vmatprep.subr.mxu0 0.0
    %1857 = vmatpush1.msra.mxu0 0.0
    %1858 = vmatprep.subr.mxu0 0.0
    %1859 = vmatpush1.msra.mxu0 0.0
    %1860 = vmatprep.subr.mxu0 0.0
    %1861 = vmatpush1.msra.mxu0 0.0
    %1862 = vmatprep.subr.mxu0 0.0
    %1863 = vmatpush1.msra.mxu0 0.0
    %1864 = vmatprep.subr.mxu0 0.0
    %1865 = vmatpush1.msra.mxu0 0.0
    %1866 = vmatprep.subr.mxu0 0.0
    %1867 = vmatpush1.msra.mxu0 0.0
    %1868 = vmatprep.subr.mxu0 0.0
    %1869 = vmatpush1.msra.mxu0 0.0
    %1870 = vmatprep.subr.mxu0 0.0
    %1871 = vmatpush1.msra.mxu0 0.0
    %1872 = vmatprep.subr.mxu0 0.0
    %1873 = vmatpush1.msra.mxu0 0.0
    %1874 = vmatprep.subr.mxu0 0.0
    %1875 = vmatpush1.msra.mxu0 0.0
    %1876 = vmatprep.subr.mxu0 0.0
    %1877 = vmatpush1.msra.mxu0 0.0
    %1878 = vmatprep.mubr.f32.mxu0 0.0
    %1879 = vmatmul.mubr.f32.gmra.mrb[0].mxu0 %v1812
    %v1880 = vpop.f32.mrb[0].mxu0
    %v1881 = vadd.f32 %v1806, %v1880
    %v1882 = vpop.f32.mrb[0].mxu0
    %1883 = vdwg.mxu0
    %v1884 = vld [vmem:[#allocation5 + $0x1b0] sm:$0x1]
    %v1885 = vlaneseq
    %v1886 = vshrl.u32 %v1885, 7
    %v1887 = vsub.s32 0, %v1886
    %v1888 = vrot.slane %v1884, %v1887
    %v1889 = vadd.f32 %v1881, %v1888
    %v1890 = vmax.f32 %v1889, 0.0
    %v1891 = vld [vmem:[#allocation5 + $0x120] sm:$0xff]
    %v1892 = vld [vmem:[#allocation5 + $0x128] sm:$0xff]
    %v1893 = vld [vmem:[#allocation5 + $0x130] sm:$0xff]
    %v1894 = vld [vmem:[#allocation5 + $0x138] sm:$0xff]
    %v1895 = vld [vmem:[#allocation5 + $0x1c0] sm:$0x1]
    %v1896 = vlaneseq
    %v1897 = vshrl.u32 %v1896, 7
    %v1898 = vsub.s32 0, %v1897
    %v1899 = vrot.slane %v1895, %v1898
    %v1901 = vsel %vm137, %v1890, 0
    %1903 = vmatprep.subr.mxu0 0.0
    %1904 = vmatpush1.msra.mxu0 %v1891
    %1905 = vmatprep.subr.mxu0 0.0
    %1906 = vmatpush1.msra.mxu0 %v1892
    %1907 = vmatprep.subr.mxu0 0.0
    %1908 = vmatpush1.msra.mxu0 %v1893
    %1909 = vmatprep.subr.mxu0 0.0
    %1910 = vmatpush1.msra.mxu0 %v1894
    %1911 = vmatprep.subr.mxu0 0.0
    %1912 = vmatpush1.msra.mxu0 0.0
    %1913 = vmatprep.subr.mxu0 0.0
    %1914 = vmatpush1.msra.mxu0 0.0
    %1915 = vmatprep.subr.mxu0 0.0
    %1916 = vmatpush1.msra.mxu0 0.0
    %1917 = vmatprep.subr.mxu0 0.0
    %1918 = vmatpush1.msra.mxu0 0.0
    %1919 = vmatprep.subr.mxu0 0.0
    %1920 = vmatpush1.msra.mxu0 0.0
    %1921 = vmatprep.subr.mxu0 0.0
    %1922 = vmatpush1.msra.mxu0 0.0
    %1923 = vmatprep.subr.mxu0 0.0
    %1924 = vmatpush1.msra.mxu0 0.0
    %1925 = vmatprep.subr.mxu0 0.0
    %1926 = vmatpush1.msra.mxu0 0.0
    %1927 = vmatprep.subr.mxu0 0.0
    %1928 = vmatpush1.msra.mxu0 0.0
    %1929 = vmatprep.subr.mxu0 0.0
    %1930 = vmatpush1.msra.mxu0 0.0
    %1931 = vmatprep.subr.mxu0 0.0
    %1932 = vmatpush1.msra.mxu0 0.0
    %1933 = vmatprep.subr.mxu0 0.0
    %1934 = vmatpush1.msra.mxu0 0.0
    %1935 = vmatprep.subr.mxu0 0.0
    %1936 = vmatpush1.msra.mxu0 0.0
    %1937 = vmatprep.subr.mxu0 0.0
    %1938 = vmatpush1.msra.mxu0 0.0
    %1939 = vmatprep.subr.mxu0 0.0
    %1940 = vmatpush1.msra.mxu0 0.0
    %1941 = vmatprep.subr.mxu0 0.0
    %1942 = vmatpush1.msra.mxu0 0.0
    %1943 = vmatprep.subr.mxu0 0.0
    %1944 = vmatpush1.msra.mxu0 0.0
    %1945 = vmatprep.subr.mxu0 0.0
    %1946 = vmatpush1.msra.mxu0 0.0
    %1947 = vmatprep.subr.mxu0 0.0
    %1948 = vmatpush1.msra.mxu0 0.0
    %1949 = vmatprep.subr.mxu0 0.0
    %1950 = vmatpush1.msra.mxu0 0.0
    %1951 = vmatprep.subr.mxu0 0.0
    %1952 = vmatpush1.msra.mxu0 0.0
    %1953 = vmatprep.subr.mxu0 0.0
    %1954 = vmatpush1.msra.mxu0 0.0
    %1955 = vmatprep.subr.mxu0 0.0
    %1956 = vmatpush1.msra.mxu0 0.0
    %1957 = vmatprep.subr.mxu0 0.0
    %1958 = vmatpush1.msra.mxu0 0.0
    %1959 = vmatprep.subr.mxu0 0.0
    %1960 = vmatpush1.msra.mxu0 0.0
    %1961 = vmatprep.subr.mxu0 0.0
    %1962 = vmatpush1.msra.mxu0 0.0
    %1963 = vmatprep.subr.mxu0 0.0
    %1964 = vmatpush1.msra.mxu0 0.0
    %1965 = vmatprep.subr.mxu0 0.0
    %1966 = vmatpush1.msra.mxu0 0.0
    %1967 = vmatprep.mubr.f32.mxu0 0.0
    %1968 = vmatmul.mubr.f32.gmra.mrb[0].mxu0 %v1901
    %v1969 = vpop.f32.mrb[0].mxu0
    %v1970 = vadd.f32 %v1899, %v1969
    %v1971 = vpop.f32.mrb[0].mxu0
    %1972 = vdwg.mxu0
    %v1973 = vtanh.pop %v1970
    %v1975 = vrot.slane %v1973, 6
    %vm1977 = vcmask 1041408
    %v1978 = vsel %vm1977, %v294, %v1975
    %v1979 = vld [vmem:[#allocation5 + $0x80] sm:$0xff]
    %v1980 = vld [vmem:[#allocation5 + $0x88] sm:$0xff]
    %v1981 = vld [vmem:[#allocation5 + $0x90] sm:$0xff]
    %v1982 = vld [vmem:[#allocation5 + $0x98] sm:$0xff]
    %v1983 = vld [vmem:[#allocation5 + $0x180] sm:$0x1]
    %v1984 = vlaneseq
    %v1985 = vshrl.u32 %v1984, 7
    %v1986 = vsub.s32 0, %v1985
    %v1987 = vrot.slane %v1983, %v1986
    %v1989 = vsel %vm137, %v1978, 0
    %1991 = vmatprep.subr.mxu0 0.0
    %1992 = vmatpush1.msra.mxu0 %v1979
    %1993 = vmatprep.subr.mxu0 0.0
    %1994 = vmatpush1.msra.mxu0 %v1980
    %1995 = vmatprep.subr.mxu0 0.0
    %1996 = vmatpush1.msra.mxu0 %v1981
    %1997 = vmatprep.subr.mxu0 0.0
    %1998 = vmatpush1.msra.mxu0 %v1982
    %1999 = vmatprep.subr.mxu0 0.0
    %2000 = vmatpush1.msra.mxu0 0.0
    %2001 = vmatprep.subr.mxu0 0.0
    %2002 = vmatpush1.msra.mxu0 0.0
    %2003 = vmatprep.subr.mxu0 0.0
    %2004 = vmatpush1.msra.mxu0 0.0
    %2005 = vmatprep.subr.mxu0 0.0
    %2006 = vmatpush1.msra.mxu0 0.0
    %2007 = vmatprep.subr.mxu0 0.0
    %2008 = vmatpush1.msra.mxu0 0.0
    %2009 = vmatprep.subr.mxu0 0.0
    %2010 = vmatpush1.msra.mxu0 0.0
    %2011 = vmatprep.subr.mxu0 0.0
    %2012 = vmatpush1.msra.mxu0 0.0
    %2013 = vmatprep.subr.mxu0 0.0
    %2014 = vmatpush1.msra.mxu0 0.0
    %2015 = vmatprep.subr.mxu0 0.0
    %2016 = vmatpush1.msra.mxu0 0.0
    %2017 = vmatprep.subr.mxu0 0.0
    %2018 = vmatpush1.msra.mxu0 0.0
    %2019 = vmatprep.subr.mxu0 0.0
    %2020 = vmatpush1.msra.mxu0 0.0
    %2021 = vmatprep.subr.mxu0 0.0
    %2022 = vmatpush1.msra.mxu0 0.0
    %2023 = vmatprep.subr.mxu0 0.0
    %2024 = vmatpush1.msra.mxu0 0.0
    %2025 = vmatprep.subr.mxu0 0.0
    %2026 = vmatpush1.msra.mxu0 0.0
    %2027 = vmatprep.subr.mxu0 0.0
    %2028 = vmatpush1.msra.mxu0 0.0
    %2029 = vmatprep.subr.mxu0 0.0
    %2030 = vmatpush1.msra.mxu0 0.0
    %2031 = vmatprep.subr.mxu0 0.0
    %2032 = vmatpush1.msra.mxu0 0.0
    %2033 = vmatprep.subr.mxu0 0.0
    %2034 = vmatpush1.msra.mxu0 0.0
    %2035 = vmatprep.subr.mxu0 0.0
    %2036 = vmatpush1.msra.mxu0 0.0
    %2037 = vmatprep.subr.mxu0 0.0
    %2038 = vmatpush1.msra.mxu0 0.0
    %2039 = vmatprep.subr.mxu0 0.0
    %2040 = vmatpush1.msra.mxu0 0.0
    %2041 = vmatprep.subr.mxu0 0.0
    %2042 = vmatpush1.msra.mxu0 0.0
    %2043 = vmatprep.subr.mxu0 0.0
    %2044 = vmatpush1.msra.mxu0 0.0
    %2045 = vmatprep.subr.mxu0 0.0
    %2046 = vmatpush1.msra.mxu0 0.0
    %2047 = vmatprep.subr.mxu0 0.0
    %2048 = vmatpush1.msra.mxu0 0.0
    %2049 = vmatprep.subr.mxu0 0.0
    %2050 = vmatpush1.msra.mxu0 0.0
    %2051 = vmatprep.subr.mxu0 0.0
    %2052 = vmatpush1.msra.mxu0 0.0
    %2053 = vmatprep.subr.mxu0 0.0
    %2054 = vmatpush1.msra.mxu0 0.0
    %2055 = vmatprep.mubr.f32.mxu0 0.0
    %2056 = vmatmul.mubr.f32.gmra.mrb[0].mxu0 %v1989
    %v2057 = vpop.f32.mrb[0].mxu0
    %v2058 = vadd.f32 %v1987, %v2057
    %v2059 = vpop.f32.mrb[0].mxu0
    %2060 = vdwg.mxu0
    %v2061 = vmax.f32 %v2058, 0.0
    %v2062 = vld [vmem:[#allocation5 + $0xa0] sm:$0xff]
    %v2063 = vld [vmem:[#allocation5 + $0xa8] sm:$0xff]
    %v2064 = vld [vmem:[#allocation5 + $0xb0] sm:$0xff]
    %v2065 = vld [vmem:[#allocation5 + $0xb8] sm:$0xff]
    %v2066 = vld [vmem:[#allocation5 + $0x190] sm:$0x1]
    %v2067 = vlaneseq
    %v2068 = vshrl.u32 %v2067, 7
    %v2069 = vsub.s32 0, %v2068
    %v2070 = vrot.slane %v2066, %v2069
    %v2072 = vsel %vm137, %v2061, 0
    %2074 = vmatprep.subr.mxu0 0.0
    %2075 = vmatpush1.msra.mxu0 %v2062
    %2076 = vmatprep.subr.mxu0 0.0
    %2077 = vmatpush1.msra.mxu0 %v2063
    %2078 = vmatprep.subr.mxu0 0.0
    %2079 = vmatpush1.msra.mxu0 %v2064
    %2080 = vmatprep.subr.mxu0 0.0
    %2081 = vmatpush1.msra.mxu0 %v2065
    %2082 = vmatprep.subr.mxu0 0.0
    %2083 = vmatpush1.msra.mxu0 0.0
    %2084 = vmatprep.subr.mxu0 0.0
    %2085 = vmatpush1.msra.mxu0 0.0
    %2086 = vmatprep.subr.mxu0 0.0
    %2087 = vmatpush1.msra.mxu0 0.0
    %2088 = vmatprep.subr.mxu0 0.0
    %2089 = vmatpush1.msra.mxu0 0.0
    %2090 = vmatprep.subr.mxu0 0.0
    %2091 = vmatpush1.msra.mxu0 0.0
    %2092 = vmatprep.subr.mxu0 0.0
    %2093 = vmatpush1.msra.mxu0 0.0
    %2094 = vmatprep.subr.mxu0 0.0
    %2095 = vmatpush1.msra.mxu0 0.0
    %2096 = vmatprep.subr.mxu0 0.0
    %2097 = vmatpush1.msra.mxu0 0.0
    %2098 = vmatprep.subr.mxu0 0.0
    %2099 = vmatpush1.msra.mxu0 0.0
    %2100 = vmatprep.subr.mxu0 0.0
    %2101 = vmatpush1.msra.mxu0 0.0
    %2102 = vmatprep.subr.mxu0 0.0
    %2103 = vmatpush1.msra.mxu0 0.0
    %2104 = vmatprep.subr.mxu0 0.0
    %2105 = vmatpush1.msra.mxu0 0.0
    %2106 = vmatprep.subr.mxu0 0.0
    %2107 = vmatpush1.msra.mxu0 0.0
    %2108 = vmatprep.subr.mxu0 0.0
    %2109 = vmatpush1.msra.mxu0 0.0
    %2110 = vmatprep.subr.mxu0 0.0
    %2111 = vmatpush1.msra.mxu0 0.0
    %2112 = vmatprep.subr.mxu0 0.0
    %2113 = vmatpush1.msra.mxu0 0.0
    %2114 = vmatprep.subr.mxu0 0.0
    %2115 = vmatpush1.msra.mxu0 0.0
    %2116 = vmatprep.subr.mxu0 0.0
    %2117 = vmatpush1.msra.mxu0 0.0
    %2118 = vmatprep.subr.mxu0 0.0
    %2119 = vmatpush1.msra.mxu0 0.0
    %2120 = vmatprep.subr.mxu0 0.0
    %2121 = vmatpush1.msra.mxu0 0.0
    %2122 = vmatprep.subr.mxu0 0.0
    %2123 = vmatpush1.msra.mxu0 0.0
    %2124 = vmatprep.subr.mxu0 0.0
    %2125 = vmatpush1.msra.mxu0 0.0
    %2126 = vmatprep.subr.mxu0 0.0
    %2127 = vmatpush1.msra.mxu0 0.0
    %2128 = vmatprep.subr.mxu0 0.0
    %2129 = vmatpush1.msra.mxu0 0.0
    %2130 = vmatprep.subr.mxu0 0.0
    %2131 = vmatpush1.msra.mxu0 0.0
    %2132 = vmatprep.subr.mxu0 0.0
    %2133 = vmatpush1.msra.mxu0 0.0
    %2134 = vmatprep.subr.mxu0 0.0
    %2135 = vmatpush1.msra.mxu0 0.0
    %2136 = vmatprep.subr.mxu0 0.0
    %2137 = vmatpush1.msra.mxu0 0.0
    %2138 = vmatprep.mubr.f32.mxu0 0.0
    %2139 = vmatmul.mubr.f32.gmra.mrb[0].mxu0 %v2072
    %v2140 = vpop.f32.mrb[0].mxu0
    %v2141 = vadd.f32 %v2070, %v2140
    %v2142 = vpop.f32.mrb[0].mxu0
    %2143 = vdwg.mxu0
    %v2144 = vmax.f32 %v2141, 0.0
    %v2145 = vld [vmem:[#allocation5 + $0xc0] sm:$0xff]
    %v2146 = vld [vmem:[#allocation5 + $0xc8] sm:$0xff]
    %v2147 = vld [vmem:[#allocation5 + $0xd0] sm:$0xff]
    %v2148 = vld [vmem:[#allocation5 + $0xd8] sm:$0xff]
    %v2149 = vld [vmem:[#allocation5 + $0x1a0] sm:$0x1]
    %v2150 = vlaneseq
    %v2151 = vshrl.u32 %v2150, 7
    %v2152 = vsub.s32 0, %v2151
    %v2153 = vrot.slane %v2149, %v2152
    %v2155 = vsel %vm137, %v2144, 0
    %2157 = vmatprep.subr.mxu0 0.0
    %2158 = vmatpush1.msra.mxu0 %v2145
    %2159 = vmatprep.subr.mxu0 0.0
    %2160 = vmatpush1.msra.mxu0 %v2146
    %2161 = vmatprep.subr.mxu0 0.0
    %2162 = vmatpush1.msra.mxu0 %v2147
    %2163 = vmatprep.subr.mxu0 0.0
    %2164 = vmatpush1.msra.mxu0 %v2148
    %2165 = vmatprep.subr.mxu0 0.0
    %2166 = vmatpush1.msra.mxu0 0.0
    %2167 = vmatprep.subr.mxu0 0.0
    %2168 = vmatpush1.msra.mxu0 0.0
    %2169 = vmatprep.subr.mxu0 0.0
    %2170 = vmatpush1.msra.mxu0 0.0
    %2171 = vmatprep.subr.mxu0 0.0
    %2172 = vmatpush1.msra.mxu0 0.0
    %2173 = vmatprep.subr.mxu0 0.0
    %2174 = vmatpush1.msra.mxu0 0.0
    %2175 = vmatprep.subr.mxu0 0.0
    %2176 = vmatpush1.msra.mxu0 0.0
    %2177 = vmatprep.subr.mxu0 0.0
    %2178 = vmatpush1.msra.mxu0 0.0
    %2179 = vmatprep.subr.mxu0 0.0
    %2180 = vmatpush1.msra.mxu0 0.0
    %2181 = vmatprep.subr.mxu0 0.0
    %2182 = vmatpush1.msra.mxu0 0.0
    %2183 = vmatprep.subr.mxu0 0.0
    %2184 = vmatpush1.msra.mxu0 0.0
    %2185 = vmatprep.subr.mxu0 0.0
    %2186 = vmatpush1.msra.mxu0 0.0
    %2187 = vmatprep.subr.mxu0 0.0
    %2188 = vmatpush1.msra.mxu0 0.0
    %2189 = vmatprep.subr.mxu0 0.0
    %2190 = vmatpush1.msra.mxu0 0.0
    %2191 = vmatprep.subr.mxu0 0.0
    %2192 = vmatpush1.msra.mxu0 0.0
    %2193 = vmatprep.subr.mxu0 0.0
    %2194 = vmatpush1.msra.mxu0 0.0
    %2195 = vmatprep.subr.mxu0 0.0
    %2196 = vmatpush1.msra.mxu0 0.0
    %2197 = vmatprep.subr.mxu0 0.0
    %2198 = vmatpush1.msra.mxu0 0.0
    %2199 = vmatprep.subr.mxu0 0.0
    %2200 = vmatpush1.msra.mxu0 0.0
    %2201 = vmatprep.subr.mxu0 0.0
    %2202 = vmatpush1.msra.mxu0 0.0
    %2203 = vmatprep.subr.mxu0 0.0
    %2204 = vmatpush1.msra.mxu0 0.0
    %2205 = vmatprep.subr.mxu0 0.0
    %2206 = vmatpush1.msra.mxu0 0.0
    %2207 = vmatprep.subr.mxu0 0.0
    %2208 = vmatpush1.msra.mxu0 0.0
    %2209 = vmatprep.subr.mxu0 0.0
    %2210 = vmatpush1.msra.mxu0 0.0
    %2211 = vmatprep.subr.mxu0 0.0
    %2212 = vmatpush1.msra.mxu0 0.0
    %2213 = vmatprep.subr.mxu0 0.0
    %2214 = vmatpush1.msra.mxu0 0.0
    %2215 = vmatprep.subr.mxu0 0.0
    %2216 = vmatpush1.msra.mxu0 0.0
    %2217 = vmatprep.subr.mxu0 0.0
    %2218 = vmatpush1.msra.mxu0 0.0
    %2219 = vmatprep.subr.mxu0 0.0
    %2220 = vmatpush1.msra.mxu0 0.0
    %2221 = vmatprep.mubr.f32.mxu0 0.0
    %2222 = vmatmul.mubr.f32.gmra.mrb[0].mxu0 %v2155
    %v2223 = vpop.f32.mrb[0].mxu0
    %v2224 = vadd.f32 %v2153, %v2223
    %v2225 = vpop.f32.mrb[0].mxu0
    %2226 = vdwg.mxu0
    %vm2227 = vcmask 254976
    %2228 = vst.msk [vmem:[#allocation7] sm:$0x3] %vm2227, %v294
    %2230 = vrot.lane.b32.xlu0 %v2224, 32
    %v2231 = vpop.permute.xlu0 %2230
    %vm2233 = vcmask 386304
    %2234 = vst.msk [vmem:[#allocation7] sm:$0x3] %vm2233, %v2231
    %2235 = vrot.lane.b32.xlu0 %v1973, 48
    %v2236 = vpop.permute.xlu0 %2235
    %vm2238 = vcmask 648576
    %2239 = vst.msk [vmem:[#allocation7] sm:$0x3] %vm2238, %v2236
    %2240 = vrot.lane.b32.xlu0 %v2224, 80
    %v2241 = vpop.permute.xlu0 %2240
    %vm2243 = vcmask 781954
    %2244 = vst.msk [vmem:[#allocation7 - $0x2] sm:$0xc] %vm2243, %v2241
    %vm2245 = vcmask 1042176
    %2246 = vst.msk [vmem:[#allocation7] sm:$0x3] %vm2245, 0.0
    // Predicated region
    $region18: #{tpu_custom_call.1} parent=1 // pred_check
      _
    $region19: #{tpu_custom_call.1} parent=1 // pred_check_branch
      %2248 = sbr.rel (0) target = $region21
    $region20: #{tpu_custom_call.1} parent=1 // pred_region
      %s2250 = ssub.s32 32, 32
      %2251 = vsyncadd [#allocation4], %s2250
      %s2253 = sshll.u32 [#allocation7], 4
      %s2254 = int_to_ptr.vmem [resolvable:$true] %s2253
      %2256 = dma.vmem_to_hbm [thread:$0]  %s2254, 32, %s2, [#allocation4]
    $region21: #{tpu_custom_call.1} parent=1 // pred_fallthru
      _
    // Predicated region
    $region22: #{tpu_custom_call.1} parent=1 // pred_check
      _
    $region23: #{tpu_custom_call.1} parent=1 // pred_check_branch
      %2258 = sbr.rel (0) target = $region25
    $region24: #{tpu_custom_call.1} parent=1 // pred_region
      %2259 = dma.done [#allocation4], 32
    $region25: #{tpu_custom_call.1} parent=1 // pred_fallthru
      _
    %2260 = vsyncpa [#allocation3], 1
    %2261 = vsyncpa [#allocation6], 1
    %2262 = vsyncpa [#allocation4], 1

</llo_original>
